<compile_context>
chip_gen: v7x
topology: tpu7x:2x2x1
jax: 0.10.0
libtpu: 0.0.40
codegen_flags: <defaults>
</compile_context>

<pallas_src>
import functools

import jax
import jax.numpy as jnp
from jax import lax
from jax.experimental import pallas as pl
from jax.experimental.pallas import tpu as pltpu


# ----------------------------------------------------------------------------
# Pallas kernel: fused (conv-as-one-matmul x2 branches) + instance-norm + gate
# ----------------------------------------------------------------------------
def _make_downsample_kernel(c_pad, p_per_sample):
    eps = 1e-5
    inv_p = 1.0 / float(p_per_sample)
    c2 = 2 * c_pad

    def kernel(p_ref,      # [K, L]        im2col patches, L = tile_n*P (bf16)
               w_ref,      # [2*Cp, K]     fused conv|gate weights (bf16)
               aff_ref,    # [2*Cp, 2]     col 0 = gamma, col 1 = beta (f32)
               sel_ref,    # [L, tn_pad]   block-diag selector (f32)
               selt_ref,   # [tn_pad, L]   its transpose (f32)
               o_ref):     # [Cp, L]       gated output (f32)
        # Both branches in ONE wide MXU matmul (bf16 streams, f32 accumulate).
        # Conv bias omitted: it cancels exactly under the mean subtraction.
        h = jnp.dot(w_ref[...], p_ref[...],
                    preferred_element_type=jnp.float32)           # [2Cp, L]
        gamma = aff_ref[:, 0:1]                                   # [2Cp, 1]
        beta = aff_ref[:, 1:2]                                    # [2Cp, 1]

        # Per-(channel, sample) sums / sums-of-squares via one small f32
        # matmul against the block-diagonal selector: stays lane-dense, no
        # lane<->sublane relayouts, and the reduction rides on the MXU.
        hh = jnp.concatenate([h, h * h], axis=0)                  # [4Cp, L]
        sums = jnp.dot(hh, sel_ref[...],
                       preferred_element_type=jnp.float32,
                       precision=lax.Precision.HIGHEST)           # [4Cp, tn_pad]
        mean = sums[:c2] * inv_p                                  # [2Cp, tn_pad]
        # One-pass variance (E[h^2]-mean^2) can lose digits when |mean|>>std;
        # it is clamped at 0 and computed from the f32 MXU accumulator.
        var = jnp.maximum(sums[c2:] * inv_p - mean * mean, 0.0)
        scale = gamma * lax.rsqrt(var + eps)                      # gamma folded in
        shift = beta - mean * scale

        # Broadcast per-sample scale/shift back onto the lane axis (MXU again;
        # exact because the selector is 0/1 and precision is HIGHEST).
        ss = jnp.concatenate([scale, shift], axis=0)              # [4Cp, tn_pad]
        ssf = jnp.dot(ss, selt_ref[...],
                      preferred_element_type=jnp.float32,
                      precision=lax.Precision.HIGHEST)            # [4Cp, L]
        y = h * ssf[:c2] + ssf[c2:]                               # [2Cp, L]

        # GLU-style gate: rows [0:Cp] = conv branch, rows [Cp:2Cp] = gate.
        o_ref[...] = (y[:c_pad] * jax.nn.sigmoid(y[c_pad:c2])).astype(o_ref.dtype)

    return kernel


# ----------------------------------------------------------------------------
# Host-side glue: im2col ([K, N*P] layout), parameter fusion, tiling, call
# ----------------------------------------------------------------------------
def _im2col_k_np(x, kh, kw, stride, padding):
    """x: [N, C, H, W] -> patches [C*kh*kw, N*H_out*W_out].

    K order = (C_in, kh, kw) with kw fastest, matching PyTorch's
    Conv2d weight.reshape(C_out, -1) flattening.  Samples are concatenated on
    the lane (last) axis, P fastest within each sample.
    """
    n, c, h, w = x.shape
    h_out = (h + 2 * padding - kh) // stride + 1
    w_out = (w + 2 * padding - kw) // stride + 1
    xp = jnp.pad(x, ((0, 0), (0, 0), (padding, padding), (padding, padding)))
    cols = []
    for i in range(kh):
        for j in range(kw):
            cols.append(xp[:, :, i:i + stride * h_out:stride,
                              j:j + stride * w_out:stride])      # [N, C, Ho, Wo]
    stacked = jnp.stack(cols, axis=2)                            # [N, C, kh*kw, Ho, Wo]
    patches = stacked.reshape(n, c * kh * kw, h_out * w_out)     # [N, K, P]
    patches = jnp.transpose(patches, (1, 0, 2)).reshape(
        c * kh * kw, n * h_out * w_out)                          # [K, N*P]
    return patches, h_out, w_out


def _tpu_vmem_and_cores():
    """VMEM capacity + likely TensorCore count (generation-aware tiling)."""
    try:
        info = pltpu.get_tpu_info()
        vmem = int(getattr(info, "vmem_capacity_bytes", 64 * 1024 * 1024))
    except Exception:                       # no TPU info -> conservative default
        vmem = 64 * 1024 * 1024
    # v7x exposes 64 MiB per TensorCore and has 2 TCs/chip; v5e/v6e: 128 MiB, 1 TC.
    n_tc = 2 if vmem <= 64 * 1024 * 1024 else 1
    return vmem, n_tc


def _pick_tile_n(n, p, k_dim, c_pad, vmem_budget_bytes, min_grid_steps):
    """Largest per-step sample count whose blocks fit the VMEM budget, keeping
    the lane block a multiple of 128 and (on 2-TC chips) >= 2 grid steps."""
    def valid(t):                   # BlockSpec lane-dim rule: %128 or full dim
        return (t * p) % 128 == 0 or t == n

    def fits(t):
        l = t * p
        patches = 2 * k_dim * l * 2          # bf16 input block, double-buffered
        out = 2 * c_pad * l * 4              # f32 output block, double-buffered
        interm = 14 * c_pad * l * 4          # h, h*h, ssf, y, gate, ...
        return patches + out + interm <= vmem_budget_bytes

    divisors = [t for t in range(1, n + 1) if n % t == 0]
    for t in sorted(divisors, reverse=True):
        if valid(t) and fits(t) and (n // t) >= min_grid_steps:
            return t
    for t in sorted(divisors, reverse=True):
        if valid(t) and fits(t):
            return t
    for t in divisors:                       # smallest layout-valid tile
        if valid(t):
            return t
    return n


@functools.partial(jax.jit, static_argnames=("kernel_size", "stride", "padding"))
def downsample_generator_forward(x, params, *, kernel_size, stride, padding):
    """x: [N, C_in, H, W] float32.  Returns [N, C_out, H_out, W_out] float32."""
    kh = kw = kernel_size
    n = x.shape[0]
    w1, b1, g1, be1, w2, b2, g2, be2 = params
    del b1, b2  # conv bias cancels exactly under instance-norm mean subtraction
    c_out = w1.shape[0]
    c_pad = -(-c_out // 8) * 8               # keep channel rows on 8-sublane tiles

    patches, h_out, w_out = _im2col_k_np(x, kh, kw, stride, padding)   # [K, N*P]
    k_dim = patches.shape[0]
    p_dim = h_out * w_out
    patches = patches.astype(jnp.bfloat16)   # halve patch-stream HBM/VMEM traffic

    # Fuse both branches into one weight matrix [2*Cp, K] (PyTorch OIHW flatten),
    # zero-padded channel rows so gate/conv splits stay tile-aligned.
    def pack_w(w):
        return jnp.pad(w.reshape(c_out, -1), ((0, c_pad - c_out), (0, 0)))
    w_all = jnp.concatenate([pack_w(w1), pack_w(w2)], axis=0).astype(jnp.bfloat16)

    # gamma/beta of both instance norms packed into one tiny [2*Cp, 2] array;
    # padded channels use gamma=beta=0 so they produce exact zeros.
    def pack_v(v):
        return jnp.pad(v, (0, c_pad - c_out))
    aff = jnp.stack([jnp.concatenate([pack_v(g1), pack_v(g2)]),
                     jnp.concatenate([pack_v(be1), pack_v(be2)])],
                    axis=1).astype(jnp.float32)

    vmem_cap, n_tc = _tpu_vmem_and_cores()
    vmem_limit = max(min(int(0.75 * vmem_cap), 100 * 1024 * 1024), 32 * 1024 * 1024)
    min_steps = 2 if n_tc == 2 else 1        # keep both v7x TensorCores busy
    tile_n = _pick_tile_n(n, p_dim, k_dim, c_pad, vmem_limit // 2, min_steps)
    lanes = tile_n * p_dim
    grid = (n // tile_n,)

    # Block-diagonal 0/1 selector: segment-sum over each sample's P lanes; its
    # transpose broadcasts per-sample stats back onto the lane axis.  Columns
    # padded to a multiple of 8 so the tiny matmuls have clean dims.
    tn_pad = -(-tile_n // 8) * 8
    seg = jnp.arange(lanes, dtype=jnp.int32) // p_dim
    sel = (seg[:, None] == jnp.arange(tn_pad, dtype=jnp.int32)[None, :]
           ).astype(jnp.float32)                                   # [L, tn_pad]
    selt = sel.T                                                   # [tn_pad, L]

    kernel = _make_downsample_kernel(c_pad, p_dim)

    out = pl.pallas_call(
        kernel,
        out_shape=jax.ShapeDtypeStruct((c_pad, n * p_dim), jnp.float32),
        grid_spec=pltpu.PrefetchScalarGridSpec(
            num_scalar_prefetch=0,
            grid=grid,
            in_specs=[
                pl.BlockSpec((k_dim, lanes), lambda b: (0, b)),       # patches
                pl.BlockSpec((2 * c_pad, k_dim), lambda b: (0, 0)),   # weights
                pl.BlockSpec((2 * c_pad, 2), lambda b: (0, 0)),       # gamma|beta
                pl.BlockSpec((lanes, tn_pad), lambda b: (0, 0)),      # selector
                pl.BlockSpec((tn_pad, lanes), lambda b: (0, 0)),      # selector^T
            ],
            out_specs=pl.BlockSpec((c_pad, lanes), lambda b: (0, b)),
        ),
        compiler_params=pltpu.CompilerParams(
            dimension_semantics=("parallel",),
            vmem_limit_bytes=vmem_limit),
    )(patches, w_all, aff, sel, selt)

    # [Cp, N*P] (lane-dense kernel stores) -> [N, C_out, H_out, W_out];
    # one cheap host-side transpose pass.
    out = out[:c_out].reshape(c_out, n, h_out, w_out)
    return jnp.transpose(out, (1, 0, 2, 3))


# ----------------------------------------------------------------------------
# Pure-JAX reference (sanity check against the kernel)
# ----------------------------------------------------------------------------
def _reference(x, params, *, kernel_size, stride, padding, cast_bf16=True):
    """Pure-JAX reference.  cast_bf16 mirrors the kernel's bf16 patch/weight
    streams so the comparison isolates kernel math from quantization."""
    w1, b1, g1, be1, w2, b2, g2, be2 = params
    eps = 1e-5
    if cast_bf16:
        x = x.astype(jnp.bfloat16).astype(jnp.float32)
        w1 = w1.astype(jnp.bfloat16).astype(jnp.float32)
        w2 = w2.astype(jnp.bfloat16).astype(jnp.float32)

    def branch(w, b, g, be):
        y = lax.conv_general_dilated(
            x, w, window_strides=(stride, stride),
            padding=[(padding, padding), (padding, padding)],
            dimension_numbers=("NCHW", "OIHW", "NCHW"))
        y = y + b.reshape(1, -1, 1, 1)
        mean = jnp.mean(y, axis=(2, 3), keepdims=True)
        var = jnp.mean((y - mean) ** 2, axis=(2, 3), keepdims=True)
        yn = (y - mean) / jnp.sqrt(var + eps)
        return yn * g.reshape(1, -1, 1, 1) + be.reshape(1, -1, 1, 1)

    return branch(w1, b1, g1, be1) * jax.nn.sigmoid(branch(w2, b2, g2, be2))


if __name__ == "__main__":
    # Module hyperparameters (small, consistent with a downsampling block).
    in_channels, out_channels = 4, 8
    kernel_size, stride, padding = 3, 2, 1
    N, H, W = 8, 16, 16

    key = jax.random.PRNGKey(0)
    kx, kw1, kb1, kw2, kb2, kg1, kbe1, kg2, kbe2 = jax.random.split(key, 9)

    x = jax.random.normal(kx, (N, in_channels, H, W), dtype=jnp.float32)

    wshape = (out_channels, in_channels, kernel_size, kernel_size)
    w1 = 0.1 * jax.random.normal(kw1, wshape, dtype=jnp.float32)
    b1 = 0.05 * jax.random.normal(kb1, (out_channels,), dtype=jnp.float32)
    w2 = 0.1 * jax.random.normal(kw2, wshape, dtype=jnp.float32)
    b2 = 0.05 * jax.random.normal(kb2, (out_channels,), dtype=jnp.float32)
    g1 = 1.0 + 0.1 * jax.random.normal(kg1, (out_channels,), dtype=jnp.float32)
    be1 = 0.1 * jax.random.normal(kbe1, (out_channels,), dtype=jnp.float32)
    g2 = 1.0 + 0.1 * jax.random.normal(kg2, (out_channels,), dtype=jnp.float32)
    be2 = 0.1 * jax.random.normal(kbe2, (out_channels,), dtype=jnp.float32)
    params = (w1, b1, g1, be1, w2, b2, g2, be2)

    out = downsample_generator_forward(
        x, params, kernel_size=kernel_size, stride=stride, padding=padding)
    out = jax.block_until_ready(out)

    ref = _reference(x, params, kernel_size=kernel_size, stride=stride,
                     padding=padding, cast_bf16=True)
    assert out.shape == (N, out_channels, H // 2, W // 2)
    err = float(jnp.max(jnp.abs(out - ref)))
    # bf16 patch/weight streams -> compare against a bf16-input reference with
    # a correspondingly loosened tolerance.
    assert jnp.allclose(out, ref, atol=5e-3, rtol=5e-3), err
    print("KERNEL_OK")
</pallas_src>

<mosaic_0001>
module attributes {stable_mosaic.version = 11 : i64} {
  func.func @kernel(%arg0: i32, %arg1: memref<36x256xbf16, #tpu.memory_space<vmem>>, %arg2: memref<16x36xbf16, #tpu.memory_space<vmem>>, %arg3: memref<16x2xf32, #tpu.memory_space<vmem>>, %arg4: memref<256x8xf32, #tpu.memory_space<vmem>>, %arg5: memref<8x256xf32, #tpu.memory_space<vmem>>, %arg6: memref<8x256xf32, #tpu.memory_space<vmem>>) attributes {dimension_semantics = [#tpu.dimension_semantics<parallel>], iteration_bounds = array<i64: 2>, scalar_prefetch = 0 : i64, scratch_operands = 0 : i64, tpu.core_type = #tpu.core_type<tc>, window_params = [{transform_indices = @transform_0, window_bounds = array<i64: 36, 256>}, {pipeline_mode = #tpu.pipeline_mode<synchronous>, transform_indices = @transform_1, window_bounds = array<i64: 16, 36>}, {pipeline_mode = #tpu.pipeline_mode<synchronous>, transform_indices = @transform_2, window_bounds = array<i64: 16, 2>}, {pipeline_mode = #tpu.pipeline_mode<synchronous>, transform_indices = @transform_3, window_bounds = array<i64: 256, 8>}, {pipeline_mode = #tpu.pipeline_mode<synchronous>, transform_indices = @transform_4, window_bounds = array<i64: 8, 256>}, {transform_indices = @transform_5, window_bounds = array<i64: 8, 256>}]} {
    %c0 = arith.constant 0 : index
    %c0_0 = arith.constant 0 : index
    %0 = vector.load %arg2[%c0, %c0_0] : memref<16x36xbf16, #tpu.memory_space<vmem>>, vector<16x36xbf16>
    %c0_1 = arith.constant 0 : index
    %c0_2 = arith.constant 0 : index
    %1 = vector.load %arg1[%c0_1, %c0_2] : memref<36x256xbf16, #tpu.memory_space<vmem>>, vector<36x256xbf16>
    %cst = arith.constant dense<0.000000e+00> : vector<16x256xf32>
    %2 = tpu.matmul %0, %1, %cst {dimension_numbers = #tpu.dot_dimension_numbers<[1], [0], [0], [1], [0, 0, 1, 1], [], []>} : vector<16x36xbf16>, vector<36x256xbf16>, vector<16x256xf32> -> vector<16x256xf32>
    %c0_3 = arith.constant 0 : index
    %c0_4 = arith.constant 0 : index
    %3 = vector.load %arg3[%c0_3, %c0_4] : memref<16x2xf32, #tpu.memory_space<vmem>>, vector<16x1xf32>
    %c0_5 = arith.constant 0 : index
    %c1 = arith.constant 1 : index
    %4 = vector.load %arg3[%c0_5, %c1] : memref<16x2xf32, #tpu.memory_space<vmem>>, vector<16x1xf32>
    %5 = arith.mulf %2, %2 : vector<16x256xf32>
    %6 = tpu.concatenate %2, %5 in 0 : vector<16x256xf32>, vector<16x256xf32> -> vector<32x256xf32>
    %c0_6 = arith.constant 0 : index
    %c0_7 = arith.constant 0 : index
    %7 = vector.load %arg4[%c0_6, %c0_7] : memref<256x8xf32, #tpu.memory_space<vmem>>, vector<256x8xf32>
    %cst_8 = arith.constant dense<0.000000e+00> : vector<32x8xf32>
    %8 = tpu.matmul %6, %7, %cst_8 {dimension_numbers = #tpu.dot_dimension_numbers<[1], [0], [0], [1], [0, 0, 1, 1], [], []>, precision = #tpu.contract_precision<fp32>} : vector<32x256xf32>, vector<256x8xf32>, vector<32x8xf32> -> vector<32x8xf32>
    %9 = vector.extract_strided_slice %8 {offsets = [0, 0], sizes = [16, 8], strides = [1, 1]} : vector<32x8xf32> to vector<16x8xf32>
    %cst_9 = arith.constant 1.562500e-02 : f32
    %10 = vector.broadcast %cst_9 : f32 to vector<16x8xf32>
    %11 = arith.mulf %9, %10 : vector<16x8xf32>
    %12 = vector.extract_strided_slice %8 {offsets = [16, 0], sizes = [16, 8], strides = [1, 1]} : vector<32x8xf32> to vector<16x8xf32>
    %cst_10 = arith.constant 1.562500e-02 : f32
    %13 = vector.broadcast %cst_10 : f32 to vector<16x8xf32>
    %14 = arith.mulf %12, %13 : vector<16x8xf32>
    %15 = arith.mulf %11, %11 : vector<16x8xf32>
    %16 = arith.subf %14, %15 : vector<16x8xf32>
    %cst_11 = arith.constant 0.000000e+00 : f32
    %17 = vector.broadcast %cst_11 : f32 to vector<16x8xf32>
    %18 = arith.maximumf %16, %17 : vector<16x8xf32>
    %cst_12 = arith.constant 9.99999974E-6 : f32
    %19 = vector.broadcast %cst_12 : f32 to vector<16x8xf32>
    %20 = arith.addf %18, %19 : vector<16x8xf32>
    %21 = math.rsqrt %20 : vector<16x8xf32>
    %22 = vector.broadcast %3 : vector<16x1xf32> to vector<16x8xf32>
    %23 = arith.mulf %22, %21 : vector<16x8xf32>
    %24 = arith.mulf %11, %23 : vector<16x8xf32>
    %25 = vector.broadcast %4 : vector<16x1xf32> to vector<16x8xf32>
    %26 = arith.subf %25, %24 : vector<16x8xf32>
    %27 = tpu.concatenate %23, %26 in 0 : vector<16x8xf32>, vector<16x8xf32> -> vector<32x8xf32>
    %c0_13 = arith.constant 0 : index
    %c0_14 = arith.constant 0 : index
    %28 = vector.load %arg5[%c0_13, %c0_14] : memref<8x256xf32, #tpu.memory_space<vmem>>, vector<8x256xf32>
    %cst_15 = arith.constant dense<0.000000e+00> : vector<32x256xf32>
    %29 = tpu.matmul %27, %28, %cst_15 {dimension_numbers = #tpu.dot_dimension_numbers<[1], [0], [0], [1], [0, 0, 1, 1], [], []>, precision = #tpu.contract_precision<fp32>} : vector<32x8xf32>, vector<8x256xf32>, vector<32x256xf32> -> vector<32x256xf32>
    %30 = vector.extract_strided_slice %29 {offsets = [0, 0], sizes = [16, 256], strides = [1, 1]} : vector<32x256xf32> to vector<16x256xf32>
    %31 = arith.mulf %2, %30 : vector<16x256xf32>
    %32 = vector.extract_strided_slice %29 {offsets = [16, 0], sizes = [16, 256], strides = [1, 1]} : vector<32x256xf32> to vector<16x256xf32>
    %33 = arith.addf %31, %32 : vector<16x256xf32>
    %34 = vector.extract_strided_slice %33 {offsets = [0, 0], sizes = [8, 256], strides = [1, 1]} : vector<16x256xf32> to vector<8x256xf32>
    %35 = vector.extract_strided_slice %33 {offsets = [8, 0], sizes = [8, 256], strides = [1, 1]} : vector<16x256xf32> to vector<8x256xf32>
    %36 = arith.negf %35 : vector<8x256xf32>
    %37 = math.exp %36 : vector<8x256xf32>
    %cst_16 = arith.constant 1.000000e+00 : f32
    %38 = vector.broadcast %cst_16 : f32 to vector<8x256xf32>
    %39 = arith.addf %38, %37 : vector<8x256xf32>
    %40 = arith.divf %38, %39 : vector<8x256xf32>
    %41 = arith.mulf %34, %40 : vector<8x256xf32>
    %c0_17 = arith.constant 0 : index
    %c0_18 = arith.constant 0 : index
    %42 = vector.load %arg6[%c0_17, %c0_18] : memref<8x256xf32, #tpu.memory_space<vmem>>, vector<8x256xf32>
    tpu.vector_store %arg6[%c0_17, %c0_18], %41 {strides = array<i32>} : memref<8x256xf32, #tpu.memory_space<vmem>>, vector<8x256xf32>,
    return
  }
  func.func @transform_0(%arg0: i32) -> (i32, i32) {
    %c0_i32 = arith.constant 0 : i32
    %c0_i32_0 = arith.constant 0 : i32
    return %c0_i32, %arg0 : i32, i32
  }
  func.func @transform_1(%arg0: i32) -> (i32, i32) {
    %c0_i32 = arith.constant 0 : i32
    %c0_i32_0 = arith.constant 0 : i32
    %c0_i32_1 = arith.constant 0 : i32
    return %c0_i32, %c0_i32_0 : i32, i32
  }
  func.func @transform_2(%arg0: i32) -> (i32, i32) {
    %c0_i32 = arith.constant 0 : i32
    %c0_i32_0 = arith.constant 0 : i32
    %c0_i32_1 = arith.constant 0 : i32
    return %c0_i32, %c0_i32_0 : i32, i32
  }
  func.func @transform_3(%arg0: i32) -> (i32, i32) {
    %c0_i32 = arith.constant 0 : i32
    %c0_i32_0 = arith.constant 0 : i32
    %c0_i32_1 = arith.constant 0 : i32
    return %c0_i32, %c0_i32_0 : i32, i32
  }
  func.func @transform_4(%arg0: i32) -> (i32, i32) {
    %c0_i32 = arith.constant 0 : i32
    %c0_i32_0 = arith.constant 0 : i32
    %c0_i32_1 = arith.constant 0 : i32
    return %c0_i32, %c0_i32_0 : i32, i32
  }
  func.func @transform_5(%arg0: i32) -> (i32, i32) {
    %c0_i32 = arith.constant 0 : i32
    %c0_i32_0 = arith.constant 0 : i32
    return %c0_i32, %arg0 : i32, i32
  }
}

</mosaic_0001>

<llo_original>
// kernel: downsample_generator_forward.1
$region0: #{downsample_generator_forward.1}
  #allocation0 [shape = 'u32[]', space=smem, size = 0x4, offset = 0x4, fixed_abs, tag = 'smem constant byte address 0x4 - core index']
  #allocation1 [shape = 'u32[144,128]{1,0:T(1,128)}', space=vmem, size = 0x12000, scoped, tag = 'internal scratch']
  %s0 = inlined_call_operand.vmem [shape: bf16[36,512], index: 0, kind: input, shape index: {}]
  %s1 = inlined_call_operand.vmem [shape: bf16[16,36], index: 1, kind: input, shape index: {}]
  %s2 = inlined_call_operand.vmem [shape: f32[16,2], index: 2, kind: input, shape index: {}]
  %s3 = inlined_call_operand.vmem [shape: f32[256,8], index: 3, kind: input, shape index: {}]
  %s4 = inlined_call_operand.vmem [shape: f32[8,256], index: 4, kind: input, shape index: {}]
  %s5 = inlined_call_operand.vmem [shape: f32[8,512], index: 5, kind: output, shape index: {}]
  %s6 = sld [smem:[#allocation0]]
  $region91: #{downsample_generator_forward.1} parent=0
    _
  %s8 = ssub.s32 1, %s6
  %s9 = scalar_select 0, %s8, %s6
  $region1: #{downsample_generator_forward.1} parent=0
    #allocation2 [shape = 'u8[40960]{0}', space=vmem, size = 0xa000, scoped, tag = 'input window, operand 0']
    loop: start=0, step=1, limit=4
    $region2: #{downsample_generator_forward.1} parent=1 // loop_pre_header
      _
    $region3: #{downsample_generator_forward.1} parent=1 // loop_header
      %s11 = sphi 0, %s15
      %p12 = scmp.ge.s32.totalorder %s11, 4
      %s21 = sphi 0, %s23
      %s24 = sphi 0, %s21
      %s25 = sphi 0, %s24
      %s41 = sphi 0, %s25
      %s45 = sphi 0, %s45
      %s47 = sphi 0, %s45
      %s48 = sphi 0, %s47
      %s62 = sphi 0, %s48
      %s66 = sphi 0, %s66
      %s68 = sphi 0, %s66
      %s69 = sphi 0, %s68
      %s83 = sphi 0, %s69
      %s87 = sphi 0, %s87
      %s89 = sphi 0, %s87
      %s90 = sphi 0, %s89
      %s104 = sphi 0, %s90
      %s108 = sphi 0, %s108
      %s110 = sphi 0, %s108
      %s111 = sphi 0, %s110
      %s125 = sphi 0, %s111
      %s131 = sphi 0, %s133
      %s134 = sphi 0, %s131
      %s135 = sphi 0, %s134
      %s151 = sphi 0, %s135
    $region4: #{downsample_generator_forward.1} parent=1 // loop_header_branch
      %14 = sbr.rel (%p12) target = $region8
    $region5: #{downsample_generator_forward.1} parent=1 // loop_body
      %s16 = ssub.s32 %s11, 1
      %s17 = ssub.s32 %s11, 2
      %s18 = sadd.s32 %s11, 1
      %s19 = ssub.s32 %s11, %s18
      %p20 = scmp.eq.s32.totalorder %s19, 0
      %s22 = sadd.s32 %s21, 1
      %s23 = scalar_select %p20, %s21, %s22
      %p26 = pneg %p20
      %p27 = scmp.eq.s32.totalorder %s11, 1
      %p28 = por %p26, %p27
      %p29 = scmp.ne.s32.totalorder %s21, %s24
      %p30 = scmp.eq.s32.totalorder %s11, 0
      %p31 = por %p29, %p30
      %p32 = scmp.ne.s32.totalorder %s21, %s24
      %p33 = scmp.eq.s32.totalorder %s16, 1
      %p34 = por %p32, %p33
      %p35 = scmp.ne.s32.totalorder %s24, %s25
      %p36 = scmp.eq.s32.totalorder %s16, 0
      %p37 = por %p35, %p36
      %p38 = scmp.ne.s32.totalorder %s24, %s25
      %p39 = scmp.eq.s32.totalorder %s17, 1
      %p40 = por %p38, %p39
      %p42 = scmp.ne.s32.totalorder %s25, %s41
      %p43 = scmp.eq.s32.totalorder %s17, 0
      %p44 = por %p42, %p43
      %s46 = sadd.s32 %s45, 1
      %p49 = scmp.eq.s32.totalorder %s11, 1
      %p50 = scmp.ne.s32.totalorder %s45, %s47
      %p51 = scmp.eq.s32.totalorder %s11, 0
      %p52 = por %p50, %p51
      %p53 = scmp.ne.s32.totalorder %s45, %s47
      %p54 = scmp.eq.s32.totalorder %s16, 1
      %p55 = por %p53, %p54
      %p56 = scmp.ne.s32.totalorder %s47, %s48
      %p57 = scmp.eq.s32.totalorder %s16, 0
      %p58 = por %p56, %p57
      %p59 = scmp.ne.s32.totalorder %s47, %s48
      %p60 = scmp.eq.s32.totalorder %s17, 1
      %p61 = por %p59, %p60
      %p63 = scmp.ne.s32.totalorder %s48, %s62
      %p64 = scmp.eq.s32.totalorder %s17, 0
      %p65 = por %p63, %p64
      %s67 = sadd.s32 %s66, 1
      %p70 = scmp.eq.s32.totalorder %s11, 1
      %p71 = scmp.ne.s32.totalorder %s66, %s68
      %p72 = scmp.eq.s32.totalorder %s11, 0
      %p73 = por %p71, %p72
      %p74 = scmp.ne.s32.totalorder %s66, %s68
      %p75 = scmp.eq.s32.totalorder %s16, 1
      %p76 = por %p74, %p75
      %p77 = scmp.ne.s32.totalorder %s68, %s69
      %p78 = scmp.eq.s32.totalorder %s16, 0
      %p79 = por %p77, %p78
      %p80 = scmp.ne.s32.totalorder %s68, %s69
      %p81 = scmp.eq.s32.totalorder %s17, 1
      %p82 = por %p80, %p81
      %p84 = scmp.ne.s32.totalorder %s69, %s83
      %p85 = scmp.eq.s32.totalorder %s17, 0
      %p86 = por %p84, %p85
      %s88 = sadd.s32 %s87, 1
      %p91 = scmp.eq.s32.totalorder %s11, 1
      %p92 = scmp.ne.s32.totalorder %s87, %s89
      %p93 = scmp.eq.s32.totalorder %s11, 0
      %p94 = por %p92, %p93
      %p95 = scmp.ne.s32.totalorder %s87, %s89
      %p96 = scmp.eq.s32.totalorder %s16, 1
      %p97 = por %p95, %p96
      %p98 = scmp.ne.s32.totalorder %s89, %s90
      %p99 = scmp.eq.s32.totalorder %s16, 0
      %p100 = por %p98, %p99
      %p101 = scmp.ne.s32.totalorder %s89, %s90
      %p102 = scmp.eq.s32.totalorder %s17, 1
      %p103 = por %p101, %p102
      %p105 = scmp.ne.s32.totalorder %s90, %s104
      %p106 = scmp.eq.s32.totalorder %s17, 0
      %p107 = por %p105, %p106
      %s109 = sadd.s32 %s108, 1
      %p112 = scmp.eq.s32.totalorder %s11, 1
      %p113 = scmp.ne.s32.totalorder %s108, %s110
      %p114 = scmp.eq.s32.totalorder %s11, 0
      %p115 = por %p113, %p114
      %p116 = scmp.ne.s32.totalorder %s108, %s110
      %p117 = scmp.eq.s32.totalorder %s16, 1
      %p118 = por %p116, %p117
      %p119 = scmp.ne.s32.totalorder %s110, %s111
      %p120 = scmp.eq.s32.totalorder %s16, 0
      %p121 = por %p119, %p120
      %p122 = scmp.ne.s32.totalorder %s110, %s111
      %p123 = scmp.eq.s32.totalorder %s17, 1
      %p124 = por %p122, %p123
      %p126 = scmp.ne.s32.totalorder %s111, %s125
      %p127 = scmp.eq.s32.totalorder %s17, 0
      %p128 = por %p126, %p127
      %s129 = ssub.s32 %s11, %s18
      %p130 = scmp.eq.s32.totalorder %s129, 0
      %s132 = sadd.s32 %s131, 1
      %s133 = scalar_select %p130, %s131, %s132
      %p136 = pneg %p130
      %p137 = scmp.eq.s32.totalorder %s11, 1
      %p138 = por %p136, %p137
      %p139 = scmp.ne.s32.totalorder %s131, %s134
      %p140 = scmp.eq.s32.totalorder %s11, 0
      %p141 = por %p139, %p140
      %p142 = scmp.ne.s32.totalorder %s131, %s134
      %p143 = scmp.eq.s32.totalorder %s16, 1
      %p144 = por %p142, %p143
      %p145 = scmp.ne.s32.totalorder %s134, %s135
      %p146 = scmp.eq.s32.totalorder %s16, 0
      %p147 = por %p145, %p146
      %p148 = scmp.ne.s32.totalorder %s134, %s135
      %p149 = scmp.eq.s32.totalorder %s17, 1
      %p150 = por %p148, %p149
      %p152 = scmp.ne.s32.totalorder %s135, %s151
      %p153 = scmp.eq.s32.totalorder %s17, 0
      %p154 = por %p152, %p153
      %p155 = scmp.le.s32.totalorder 1, %s11
      %p156 = scmp.lt.s32.totalorder %s11, 3
      %p157 = pnand %p155, %p156
      %p158 = pneg %p157
      // Predicated region
      $region9: #{downsample_generator_forward.1} parent=5 // pred_check
        _
      $region10: #{downsample_generator_forward.1} parent=5 // pred_check_branch
        %160 = sbr.rel (%p157) target = $region12
      $region11: #{downsample_generator_forward.1} parent=5 // pred_region
        %s161 = ssub.s32 %s11, 1
        // Predicated region
        $region13: #{downsample_generator_forward.1} parent=11 // pred_check
          %p162 = pneg %p58
        $region14: #{downsample_generator_forward.1} parent=11 // pred_check_branch
          %164 = sbr.rel (%p162) target = $region16
        $region15: #{downsample_generator_forward.1} parent=11 // pred_region
          _
        $region16: #{downsample_generator_forward.1} parent=11 // pred_fallthru
          _
        // Predicated region
        $region17: #{downsample_generator_forward.1} parent=11 // pred_check
          %p165 = pneg %p79
        $region18: #{downsample_generator_forward.1} parent=11 // pred_check_branch
          %167 = sbr.rel (%p165) target = $region20
        $region19: #{downsample_generator_forward.1} parent=11 // pred_region
          _
        $region20: #{downsample_generator_forward.1} parent=11 // pred_fallthru
          _
        // Predicated region
        $region21: #{downsample_generator_forward.1} parent=11 // pred_check
          %p168 = pneg %p100
        $region22: #{downsample_generator_forward.1} parent=11 // pred_check_branch
          %170 = sbr.rel (%p168) target = $region24
        $region23: #{downsample_generator_forward.1} parent=11 // pred_region
          _
        $region24: #{downsample_generator_forward.1} parent=11 // pred_fallthru
          _
        // Predicated region
        $region25: #{downsample_generator_forward.1} parent=11 // pred_check
          %p171 = pneg %p121
        $region26: #{downsample_generator_forward.1} parent=11 // pred_check_branch
          %173 = sbr.rel (%p171) target = $region28
        $region27: #{downsample_generator_forward.1} parent=11 // pred_region
          _
        $region28: #{downsample_generator_forward.1} parent=11 // pred_fallthru
          _
      $region12: #{downsample_generator_forward.1} parent=5 // pred_fallthru
        _
      %p174 = scmp.lt.s32.totalorder %s11, 2
      // Predicated region
      $region29: #{downsample_generator_forward.1} parent=5 // pred_check
        %p175 = pneg %p174
      $region30: #{downsample_generator_forward.1} parent=5 // pred_check_branch
        %177 = sbr.rel (%p175) target = $region32
      $region31: #{downsample_generator_forward.1} parent=5 // pred_region
        // Predicated region
        $region33: #{downsample_generator_forward.1} parent=31 // pred_check
          %p178 = pneg %p31
        $region34: #{downsample_generator_forward.1} parent=31 // pred_check_branch
          %180 = sbr.rel (%p178) target = $region36
        $region35: #{downsample_generator_forward.1} parent=31 // pred_region
          %s181 = sand.u32 %s21, 1
          %s182 = sand.u32 %s21, 1
          %s183 = smul.addr %s182, 40
          %s184 = scalar_lea.vmem [#allocation2], %s183
          %s185 = smul.u32 2, %s11
          %s186 = smul.addr %s185, 4
          %s187 = scalar_lea.vmem %s0, %s186
          // Predicated region
          $region37: #{downsample_generator_forward.1} parent=35 // pred_check
            _
          $region38: #{downsample_generator_forward.1} parent=35 // pred_check_branch
            %189 = sbr.rel (0) target = $region40
          $region39: #{downsample_generator_forward.1} parent=35 // pred_region
            // Predicated region
            $region41: #{downsample_generator_forward.1} parent=39 // pred_check
              _
            $region42: #{downsample_generator_forward.1} parent=39 // pred_check_branch
              %191 = sbr.rel (0) target = $region44
            $region43: #{downsample_generator_forward.1} parent=39 // pred_region
              // Predicated region
              $region56: #{downsample_generator_forward.1} parent=43 // pred_check
                _
              $region57: #{downsample_generator_forward.1} parent=43 // pred_check_branch
                %214 = sbr.rel (0) target = $region59
              $region58: #{downsample_generator_forward.1} parent=43 // pred_region
                loop: start=0, step=1, limit=1
                $region60: #{downsample_generator_forward.1} parent=58 // loop_pre_header
                  _
                $region61: #{downsample_generator_forward.1} parent=58 // loop_header
                  %s216 = sphi 0, %s220
                  %p217 = scmp.ge.s32.totalorder %s216, 1
                  %s221 = sphi %s187, %s187
                  %s222 = sphi %s184, %s184
                $region62: #{downsample_generator_forward.1} parent=58 // loop_header_branch
                  %219 = sbr.rel (%p217) target = $region66
                $region63: #{downsample_generator_forward.1} parent=58 // loop_body
                  %v223 = vld [vmem:[%s221] sm:$0xff]
                  %224 = vst [vmem:[%s222] sm:$0xff] %v223
                  %v225 = vld [vmem:[%s221 + $0x10] sm:$0xff]
                  %226 = vst [vmem:[%s222 + $0x8] sm:$0xff] %v225
                  %v227 = vld [vmem:[%s221 + $0x20] sm:$0xff]
                  %228 = vst [vmem:[%s222 + $0x10] sm:$0xff] %v227
                  %v229 = vld [vmem:[%s221 + $0x30] sm:$0xff]
                  %230 = vst [vmem:[%s222 + $0x18] sm:$0xff] %v229
                  %v231 = vld [vmem:[%s221 + $0x40] sm:$0xff]
                  %232 = vst [vmem:[%s222 + $0x20] sm:$0xff] %v231
                $region64: #{downsample_generator_forward.1} parent=58 // loop_footer
                  %s220 = sadd.s32 1, %s216
                $region65: #{downsample_generator_forward.1} parent=58 // loop_footer_branch
                  %215 = sbr.rel target = $region61
                $region66: #{downsample_generator_forward.1} parent=58 // loop_exit
                  _
              $region59: #{downsample_generator_forward.1} parent=43 // pred_fallthru
                _
              // Predicated region
              $region67: #{downsample_generator_forward.1} parent=43 // pred_check
                _
              $region68: #{downsample_generator_forward.1} parent=43 // pred_check_branch
                %234 = sbr.rel target = $region70
              $region69: #{downsample_generator_forward.1} parent=43 // pred_region
                _
              $region70: #{downsample_generator_forward.1} parent=43 // pred_fallthru
                _
            $region44: #{downsample_generator_forward.1} parent=39 // pred_fallthru
              _
            // Predicated region
            $region45: #{downsample_generator_forward.1} parent=39 // pred_check
              _
            $region46: #{downsample_generator_forward.1} parent=39 // pred_check_branch
              %193 = sbr.rel target = $region48
            $region47: #{downsample_generator_forward.1} parent=39 // pred_region
              loop: start=0, step=1, limit=1
              $region49: #{downsample_generator_forward.1} parent=47 // loop_pre_header
                _
              $region50: #{downsample_generator_forward.1} parent=47 // loop_header
                %s196 = sphi 0, %s200
                %p197 = scmp.ge.s32.totalorder %s196, 1
                %s201 = sphi %s187, %s187
                %s202 = sphi %s184, %s184
              $region51: #{downsample_generator_forward.1} parent=47 // loop_header_branch
                %199 = sbr.rel (%p197) target = $region55
              $region52: #{downsample_generator_forward.1} parent=47 // loop_body
                %v203 = vld [vmem:[%s201] sm:$0xff]
                %204 = vst [vmem:[%s202] sm:$0xff] %v203
                %v205 = vld [vmem:[%s201 + $0x10] sm:$0xff]
                %206 = vst [vmem:[%s202 + $0x8] sm:$0xff] %v205
                %v207 = vld [vmem:[%s201 + $0x20] sm:$0xff]
                %208 = vst [vmem:[%s202 + $0x10] sm:$0xff] %v207
                %v209 = vld [vmem:[%s201 + $0x30] sm:$0xff]
                %210 = vst [vmem:[%s202 + $0x18] sm:$0xff] %v209
                %v211 = vld [vmem:[%s201 + $0x40] sm:$0xff]
                %212 = vst [vmem:[%s202 + $0x20] sm:$0xff] %v211
              $region53: #{downsample_generator_forward.1} parent=47 // loop_footer
                %s200 = sadd.s32 1, %s196
              $region54: #{downsample_generator_forward.1} parent=47 // loop_footer_branch
                %195 = sbr.rel target = $region50
              $region55: #{downsample_generator_forward.1} parent=47 // loop_exit
                _
            $region48: #{downsample_generator_forward.1} parent=39 // pred_fallthru
              _
          $region40: #{downsample_generator_forward.1} parent=35 // pred_fallthru
            _
          %235 = vnop
        $region36: #{downsample_generator_forward.1} parent=31 // pred_fallthru
          _
      $region32: #{downsample_generator_forward.1} parent=5 // pred_fallthru
        _
      %p236 = scmp.le.s32.totalorder 1, %s11
      %p237 = scmp.lt.s32.totalorder %s11, 3
      %p238 = pnand %p236, %p237
      %p239 = pneg %p238
      // Predicated region
      $region71: #{downsample_generator_forward.1} parent=5 // pred_check
        _
      $region72: #{downsample_generator_forward.1} parent=5 // pred_check_branch
        %241 = sbr.rel (%p238) target = $region74
      $region73: #{downsample_generator_forward.1} parent=5 // pred_region
        %s242 = ssub.s32 %s11, 1
        %s243 = sand.u32 %s24, 1
        %s244 = sand.u32 %s24, 1
        %s245 = smul.addr %s244, 40
        %s246 = scalar_lea.vmem [#allocation2], %s245
        // Predicated region
        $region75: #{downsample_generator_forward.1} parent=73 // pred_check
          %p247 = pneg %p37
        $region76: #{downsample_generator_forward.1} parent=73 // pred_check_branch
          %249 = sbr.rel (%p247) target = $region78
        $region77: #{downsample_generator_forward.1} parent=73 // pred_region
          _
        $region78: #{downsample_generator_forward.1} parent=73 // pred_fallthru
          _
        %s250 = sand.u32 %s24, 1
        %s251 = sand.u32 %s24, 1
        %s252 = smul.addr %s251, 40
        %s253 = scalar_lea.vmem [#allocation2], %s252
        %p254 = pneg %p37
        %p255 = pneg %p34
        %p256 = pneg %p58
        %p257 = pneg %p55
        %p258 = pneg %p79
        %p259 = pneg %p76
        %p260 = pneg %p100
        %p261 = pneg %p97
        %p262 = pneg %p121
        %p263 = pneg %p118
        %p264 = pneg %p147
        %p265 = pneg %p144
        %s266 = smul.u32 2, %s16
        %p267 = scmp.lt.s32.totalorder %s266, 3
        %s268 = scalar_select %p267, %s266, 3
        %s269 = smul.addr %s268, 8
        %s270 = scalar_lea.vmem %s5, %s269
        %s271 = smul.u32 2, %s16
        %s272 = smul.u32 2, %s16
        %p273 = scmp.lt.s32.totalorder %s272, 3
        %s274 = scalar_select %p273, %s272, 3
        %s275 = smul.addr %s274, 8
        %s276 = scalar_lea.vmem %s5, %s275
        %s277 = smul.u32 2, %s16
        %v279 = vld [vmem:[%s1] sm:$0xf]
        %v280 = vld [vmem:[%s1 + $0x4] sm:$0xf]
        %v281 = vld [vmem:[%s246] sm:$0xff]
        %v282 = vld [vmem:[%s246 + $0x8] sm:$0xff]
        %v283 = vld [vmem:[%s246 + $0x10] sm:$0xff]
        %v284 = vld [vmem:[%s246 + $0x18] sm:$0xff]
        %v285 = vld [vmem:[%s246 + $0x20] sm:$0x33]
        %v288 = vunpack.c.l.b16 %v279
        %v289 = vunpack.c.l.b16 %v280
        %v290 = vpack.c.b16 %v289, %v288
        %v296 = vunpack.c.l.b16 %v281
        %v297 = vunpack.c.h.b16 %v281
        %v298 = vunpack.c.l.b16 %v282
        %v299 = vunpack.c.h.b16 %v282
        %v300 = vunpack.c.l.b16 %v283
        %v301 = vunpack.c.h.b16 %v283
        %v302 = vunpack.c.l.b16 %v284
        %v303 = vunpack.c.h.b16 %v284
        %v304 = vunpack.c.l.b16 %v285
        %v305 = vunpack.c.h.b16 %v285
        %v306 = vpack.c.b16 %v298, %v296
        %v307 = vpack.c.b16 %v299, %v297
        %v308 = vpack.c.b16 %v302, %v300
        %v309 = vpack.c.b16 %v303, %v301
        %v310 = vpack.c.b16 %v304, %v304
        %v311 = vpack.c.b16 %v305, %v305
        %vm316 = vcmask 293888
        %v318 = vsel %vm316, %v290, 0
        %vm320 = vcmask 1041408
        %v322 = vsel %vm320, %v310, 0
        %v325 = vsel %vm320, %v311, 0
        %327 = vmatprep.subr.bf16.mxu0 %v307
        %328 = vmatpush1.bf16.msra.mxu0 %v306
        %329 = vmatprep.subr.bf16.mxu0 %v309
        %330 = vmatpush1.bf16.msra.mxu0 %v308
        %331 = vmatprep.subr.bf16.mxu0 %v325
        %332 = vmatpush1.bf16.msra.mxu0 %v322
        %333 = vmatprep.subr.bf16.mxu0 0
        %334 = vmatpush1.bf16.msra.mxu0 0
        %335 = vmatprep.subr.bf16.mxu0 0
        %336 = vmatpush1.bf16.msra.mxu0 0
        %337 = vmatprep.subr.bf16.mxu0 0
        %338 = vmatpush1.bf16.msra.mxu0 0
        %339 = vmatprep.subr.bf16.mxu0 0
        %340 = vmatpush1.bf16.msra.mxu0 0
        %341 = vmatprep.subr.bf16.mxu0 0
        %342 = vmatpush1.bf16.msra.mxu0 0
        %343 = vmatprep.subr.bf16.mxu0 0
        %344 = vmatpush1.bf16.msra.mxu0 0
        %345 = vmatprep.subr.bf16.mxu0 0
        %346 = vmatpush1.bf16.msra.mxu0 0
        %347 = vmatprep.subr.bf16.mxu0 0
        %348 = vmatpush1.bf16.msra.mxu0 0
        %349 = vmatprep.subr.bf16.mxu0 0
        %350 = vmatpush1.bf16.msra.mxu0 0
        %351 = vmatprep.subr.bf16.mxu0 0
        %352 = vmatpush1.bf16.msra.mxu0 0
        %353 = vmatprep.subr.bf16.mxu0 0
        %354 = vmatpush1.bf16.msra.mxu0 0
        %355 = vmatprep.subr.bf16.mxu0 0
        %356 = vmatpush1.bf16.msra.mxu0 0
        %357 = vmatprep.subr.bf16.mxu0 0
        %358 = vmatpush1.bf16.msra.mxu0 0
        %359 = vmatprep.mubr.bf16.mxu0 0
        %360 = vmatmul.mubr.bf16.gmra.mrb[0].mxu0 %v318
        %v361 = vpop.f32.mrb[0].mxu0
        %v362 = vadd.f32 0.0, %v361
        %v363 = vpop.f32.mrb[0].mxu0
        %v364 = vadd.f32 0.0, %v363
        %v365 = vpop.f32.mrb[0].mxu0
        %v366 = vadd.f32 0.0, %v365
        %v367 = vpop.f32.mrb[0].mxu0
        %v368 = vadd.f32 0.0, %v367
        %369 = vdwg.mxu0
        %v370 = vld [vmem:[%s2] sm:$0xff]
        %v371 = vld [vmem:[%s2 + $0x8] sm:$0xff]
        %v372 = vmul.f32 %v362, %v362
        %v373 = vmul.f32 %v364, %v364
        %v374 = vmul.f32 %v366, %v366
        %v375 = vmul.f32 %v368, %v368
        %v376 = vld [vmem:[%s3] sm:$0xff]
        %v377 = vld [vmem:[%s3 + $0x8] sm:$0xff]
        %v378 = vld [vmem:[%s3 + $0x10] sm:$0xff]
        %v379 = vld [vmem:[%s3 + $0x18] sm:$0xff]
        %v380 = vld [vmem:[%s3 + $0x20] sm:$0xff]
        %v381 = vld [vmem:[%s3 + $0x28] sm:$0xff]
        %v382 = vld [vmem:[%s3 + $0x30] sm:$0xff]
        %v383 = vld [vmem:[%s3 + $0x38] sm:$0xff]
        %v384 = vld [vmem:[%s3 + $0x40] sm:$0xff]
        %v385 = vld [vmem:[%s3 + $0x48] sm:$0xff]
        %v386 = vld [vmem:[%s3 + $0x50] sm:$0xff]
        %v387 = vld [vmem:[%s3 + $0x58] sm:$0xff]
        %v388 = vld [vmem:[%s3 + $0x60] sm:$0xff]
        %v389 = vld [vmem:[%s3 + $0x68] sm:$0xff]
        %v390 = vld [vmem:[%s3 + $0x70] sm:$0xff]
        %v391 = vld [vmem:[%s3 + $0x78] sm:$0xff]
        %v392 = vld [vmem:[%s3 + $0x80] sm:$0xff]
        %v393 = vld [vmem:[%s3 + $0x88] sm:$0xff]
        %v394 = vld [vmem:[%s3 + $0x90] sm:$0xff]
        %v395 = vld [vmem:[%s3 + $0x98] sm:$0xff]
        %v396 = vld [vmem:[%s3 + $0xa0] sm:$0xff]
        %v397 = vld [vmem:[%s3 + $0xa8] sm:$0xff]
        %v398 = vld [vmem:[%s3 + $0xb0] sm:$0xff]
        %v399 = vld [vmem:[%s3 + $0xb8] sm:$0xff]
        %v400 = vld [vmem:[%s3 + $0xc0] sm:$0xff]
        %v401 = vld [vmem:[%s3 + $0xc8] sm:$0xff]
        %v402 = vld [vmem:[%s3 + $0xd0] sm:$0xff]
        %v403 = vld [vmem:[%s3 + $0xd8] sm:$0xff]
        %v404 = vld [vmem:[%s3 + $0xe0] sm:$0xff]
        %v405 = vld [vmem:[%s3 + $0xe8] sm:$0xff]
        %v406 = vld [vmem:[%s3 + $0xf0] sm:$0xff]
        %v407 = vld [vmem:[%s3 + $0xf8] sm:$0xff]
        %408 = vmatprep.subr.mxu0 0.0
        %v409 = vand.u32 %v376, 4294901760
        %410 = vmatpush1.msra.mxu0 %v409
        %411 = vmatprep.subr.mxu0 0.0
        %v412 = vand.u32 %v377, 4294901760
        %413 = vmatpush1.msra.mxu0 %v412
        %414 = vmatprep.subr.mxu0 0.0
        %v415 = vand.u32 %v378, 4294901760
        %416 = vmatpush1.msra.mxu0 %v415
        %417 = vmatprep.subr.mxu0 0.0
        %v418 = vand.u32 %v379, 4294901760
        %419 = vmatpush1.msra.mxu0 %v418
        %420 = vmatprep.subr.mxu0 0.0
        %v421 = vand.u32 %v380, 4294901760
        %422 = vmatpush1.msra.mxu0 %v421
        %423 = vmatprep.subr.mxu0 0.0
        %v424 = vand.u32 %v381, 4294901760
        %425 = vmatpush1.msra.mxu0 %v424
        %426 = vmatprep.subr.mxu0 0.0
        %v427 = vand.u32 %v382, 4294901760
        %428 = vmatpush1.msra.mxu0 %v427
        %429 = vmatprep.subr.mxu0 0.0
        %v430 = vand.u32 %v383, 4294901760
        %431 = vmatpush1.msra.mxu0 %v430
        %432 = vmatprep.subr.mxu0 0.0
        %v433 = vand.u32 %v384, 4294901760
        %434 = vmatpush1.msra.mxu0 %v433
        %435 = vmatprep.subr.mxu0 0.0
        %v436 = vand.u32 %v385, 4294901760
        %437 = vmatpush1.msra.mxu0 %v436
        %438 = vmatprep.subr.mxu0 0.0
        %v439 = vand.u32 %v386, 4294901760
        %440 = vmatpush1.msra.mxu0 %v439
        %441 = vmatprep.subr.mxu0 0.0
        %v442 = vand.u32 %v387, 4294901760
        %443 = vmatpush1.msra.mxu0 %v442
        %444 = vmatprep.subr.mxu0 0.0
        %v445 = vand.u32 %v388, 4294901760
        %446 = vmatpush1.msra.mxu0 %v445
        %447 = vmatprep.subr.mxu0 0.0
        %v448 = vand.u32 %v389, 4294901760
        %449 = vmatpush1.msra.mxu0 %v448
        %450 = vmatprep.subr.mxu0 0.0
        %v451 = vand.u32 %v390, 4294901760
        %452 = vmatpush1.msra.mxu0 %v451
        %453 = vmatprep.subr.mxu0 0.0
        %v454 = vand.u32 %v391, 4294901760
        %455 = vmatpush1.msra.mxu0 %v454
        %456 = vmatprep.subr.mxu0 0.0
        %v457 = vand.u32 %v392, 4294901760
        %458 = vmatpush1.msra.mxu0 %v457
        %459 = vmatprep.subr.mxu0 0.0
        %v460 = vand.u32 %v393, 4294901760
        %461 = vmatpush1.msra.mxu0 %v460
        %462 = vmatprep.subr.mxu0 0.0
        %v463 = vand.u32 %v394, 4294901760
        %464 = vmatpush1.msra.mxu0 %v463
        %465 = vmatprep.subr.mxu0 0.0
        %v466 = vand.u32 %v395, 4294901760
        %467 = vmatpush1.msra.mxu0 %v466
        %468 = vmatprep.subr.mxu0 0.0
        %v469 = vand.u32 %v396, 4294901760
        %470 = vmatpush1.msra.mxu0 %v469
        %471 = vmatprep.subr.mxu0 0.0
        %v472 = vand.u32 %v397, 4294901760
        %473 = vmatpush1.msra.mxu0 %v472
        %474 = vmatprep.subr.mxu0 0.0
        %v475 = vand.u32 %v398, 4294901760
        %476 = vmatpush1.msra.mxu0 %v475
        %477 = vmatprep.subr.mxu0 0.0
        %v478 = vand.u32 %v399, 4294901760
        %479 = vmatpush1.msra.mxu0 %v478
        %480 = vmatprep.subr.mxu0 0.0
        %v481 = vand.u32 %v400, 4294901760
        %482 = vmatpush1.msra.mxu0 %v481
        %483 = vmatprep.subr.mxu0 0.0
        %v484 = vand.u32 %v401, 4294901760
        %485 = vmatpush1.msra.mxu0 %v484
        %486 = vmatprep.subr.mxu0 0.0
        %v487 = vand.u32 %v402, 4294901760
        %488 = vmatpush1.msra.mxu0 %v487
        %489 = vmatprep.subr.mxu0 0.0
        %v490 = vand.u32 %v403, 4294901760
        %491 = vmatpush1.msra.mxu0 %v490
        %492 = vmatprep.subr.mxu0 0.0
        %v493 = vand.u32 %v404, 4294901760
        %494 = vmatpush1.msra.mxu0 %v493
        %495 = vmatprep.subr.mxu0 0.0
        %v496 = vand.u32 %v405, 4294901760
        %497 = vmatpush1.msra.mxu0 %v496
        %498 = vmatprep.subr.mxu0 0.0
        %v499 = vand.u32 %v406, 4294901760
        %500 = vmatpush1.msra.mxu0 %v499
        %501 = vmatprep.subr.mxu0 0.0
        %v502 = vand.u32 %v407, 4294901760
        %503 = vmatpush1.msra.mxu0 %v502
        %v504 = vand.u32 %v364, 4294901760
        %v505 = vsub.f32 %v364, %v504
        %v506 = vand.u32 %v505, 4294901760
        %v507 = vsub.f32 %v505, %v506
        %v508 = vand.u32 %v507, 4294901760
        %509 = vmatprep.mubr.f32.mxu0 %v508
        %v510 = vand.u32 %v362, 4294901760
        %v511 = vsub.f32 %v362, %v510
        %v512 = vand.u32 %v511, 4294901760
        %v513 = vsub.f32 %v511, %v512
        %v514 = vand.u32 %v513, 4294901760
        %515 = vmatmul.mubr.f32.gmra.mrb[0].mxu0 %v514
        %v516 = vpop.f32.mrb[0].mxu0
        %v517 = vadd.f32 0.0, %v516
        %v518 = vpop.f32.mrb[0].mxu0
        %v519 = vand.u32 %v368, 4294901760
        %v520 = vsub.f32 %v368, %v519
        %v521 = vand.u32 %v520, 4294901760
        %v522 = vsub.f32 %v520, %v521
        %v523 = vand.u32 %v522, 4294901760
        %524 = vmatprep.mubr.f32.mxu0 %v523
        %v525 = vand.u32 %v366, 4294901760
        %v526 = vsub.f32 %v366, %v525
        %v527 = vand.u32 %v526, 4294901760
        %v528 = vsub.f32 %v526, %v527
        %v529 = vand.u32 %v528, 4294901760
        %530 = vmatmul.mubr.f32.gmra.mrb[0].mxu0 %v529
        %v531 = vpop.f32.mrb[0].mxu0
        %v532 = vadd.f32 0.0, %v531
        %v533 = vpop.f32.mrb[0].mxu0
        %v534 = vand.u32 %v373, 4294901760
        %v535 = vsub.f32 %v373, %v534
        %v536 = vand.u32 %v535, 4294901760
        %v537 = vsub.f32 %v535, %v536
        %v538 = vand.u32 %v537, 4294901760
        %539 = vmatprep.mubr.f32.mxu0 %v538
        %v540 = vand.u32 %v372, 4294901760
        %v541 = vsub.f32 %v372, %v540
        %v542 = vand.u32 %v541, 4294901760
        %v543 = vsub.f32 %v541, %v542
        %v544 = vand.u32 %v543, 4294901760
        %545 = vmatmul.mubr.f32.gmra.mrb[0].mxu0 %v544
        %v546 = vpop.f32.mrb[0].mxu0
        %v547 = vadd.f32 0.0, %v546
        %v548 = vpop.f32.mrb[0].mxu0
        %v549 = vand.u32 %v375, 4294901760
        %v550 = vsub.f32 %v375, %v549
        %v551 = vand.u32 %v550, 4294901760
        %v552 = vsub.f32 %v550, %v551
        %v553 = vand.u32 %v552, 4294901760
        %554 = vmatprep.mubr.f32.mxu0 %v553
        %v555 = vand.u32 %v374, 4294901760
        %v556 = vsub.f32 %v374, %v555
        %v557 = vand.u32 %v556, 4294901760
        %v558 = vsub.f32 %v556, %v557
        %v559 = vand.u32 %v558, 4294901760
        %560 = vmatmul.mubr.f32.gmra.mrb[0].mxu0 %v559
        %v561 = vpop.f32.mrb[0].mxu0
        %v562 = vadd.f32 0.0, %v561
        %v563 = vpop.f32.mrb[0].mxu0
        %564 = vdwg.mxu0
        %565 = vmatprep.subr.mxu0 0.0
        %v566 = vand.u32 %v376, 4294901760
        %v567 = vsub.f32 %v376, %v566
        %v568 = vand.u32 %v567, 4294901760
        %v569 = vsub.f32 %v567, %v568
        %v570 = vand.u32 %v569, 4294901760
        %571 = vmatpush1.msra.mxu0 %v570
        %572 = vmatprep.subr.mxu0 0.0
        %v573 = vand.u32 %v377, 4294901760
        %v574 = vsub.f32 %v377, %v573
        %v575 = vand.u32 %v574, 4294901760
        %v576 = vsub.f32 %v574, %v575
        %v577 = vand.u32 %v576, 4294901760
        %578 = vmatpush1.msra.mxu0 %v577
        %579 = vmatprep.subr.mxu0 0.0
        %v580 = vand.u32 %v378, 4294901760
        %v581 = vsub.f32 %v378, %v580
        %v582 = vand.u32 %v581, 4294901760
        %v583 = vsub.f32 %v581, %v582
        %v584 = vand.u32 %v583, 4294901760
        %585 = vmatpush1.msra.mxu0 %v584
        %586 = vmatprep.subr.mxu0 0.0
        %v587 = vand.u32 %v379, 4294901760
        %v588 = vsub.f32 %v379, %v587
        %v589 = vand.u32 %v588, 4294901760
        %v590 = vsub.f32 %v588, %v589
        %v591 = vand.u32 %v590, 4294901760
        %592 = vmatpush1.msra.mxu0 %v591
        %593 = vmatprep.subr.mxu0 0.0
        %v594 = vand.u32 %v380, 4294901760
        %v595 = vsub.f32 %v380, %v594
        %v596 = vand.u32 %v595, 4294901760
        %v597 = vsub.f32 %v595, %v596
        %v598 = vand.u32 %v597, 4294901760
        %599 = vmatpush1.msra.mxu0 %v598
        %600 = vmatprep.subr.mxu0 0.0
        %v601 = vand.u32 %v381, 4294901760
        %v602 = vsub.f32 %v381, %v601
        %v603 = vand.u32 %v602, 4294901760
        %v604 = vsub.f32 %v602, %v603
        %v605 = vand.u32 %v604, 4294901760
        %606 = vmatpush1.msra.mxu0 %v605
        %607 = vmatprep.subr.mxu0 0.0
        %v608 = vand.u32 %v382, 4294901760
        %v609 = vsub.f32 %v382, %v608
        %v610 = vand.u32 %v609, 4294901760
        %v611 = vsub.f32 %v609, %v610
        %v612 = vand.u32 %v611, 4294901760
        %613 = vmatpush1.msra.mxu0 %v612
        %614 = vmatprep.subr.mxu0 0.0
        %v615 = vand.u32 %v383, 4294901760
        %v616 = vsub.f32 %v383, %v615
        %v617 = vand.u32 %v616, 4294901760
        %v618 = vsub.f32 %v616, %v617
        %v619 = vand.u32 %v618, 4294901760
        %620 = vmatpush1.msra.mxu0 %v619
        %621 = vmatprep.subr.mxu0 0.0
        %v622 = vand.u32 %v384, 4294901760
        %v623 = vsub.f32 %v384, %v622
        %v624 = vand.u32 %v623, 4294901760
        %v625 = vsub.f32 %v623, %v624
        %v626 = vand.u32 %v625, 4294901760
        %627 = vmatpush1.msra.mxu0 %v626
        %628 = vmatprep.subr.mxu0 0.0
        %v629 = vand.u32 %v385, 4294901760
        %v630 = vsub.f32 %v385, %v629
        %v631 = vand.u32 %v630, 4294901760
        %v632 = vsub.f32 %v630, %v631
        %v633 = vand.u32 %v632, 4294901760
        %634 = vmatpush1.msra.mxu0 %v633
        %635 = vmatprep.subr.mxu0 0.0
        %v636 = vand.u32 %v386, 4294901760
        %v637 = vsub.f32 %v386, %v636
        %v638 = vand.u32 %v637, 4294901760
        %v639 = vsub.f32 %v637, %v638
        %v640 = vand.u32 %v639, 4294901760
        %641 = vmatpush1.msra.mxu0 %v640
        %642 = vmatprep.subr.mxu0 0.0
        %v643 = vand.u32 %v387, 4294901760
        %v644 = vsub.f32 %v387, %v643
        %v645 = vand.u32 %v644, 4294901760
        %v646 = vsub.f32 %v644, %v645
        %v647 = vand.u32 %v646, 4294901760
        %648 = vmatpush1.msra.mxu0 %v647
        %649 = vmatprep.subr.mxu0 0.0
        %v650 = vand.u32 %v388, 4294901760
        %v651 = vsub.f32 %v388, %v650
        %v652 = vand.u32 %v651, 4294901760
        %v653 = vsub.f32 %v651, %v652
        %v654 = vand.u32 %v653, 4294901760
        %655 = vmatpush1.msra.mxu0 %v654
        %656 = vmatprep.subr.mxu0 0.0
        %v657 = vand.u32 %v389, 4294901760
        %v658 = vsub.f32 %v389, %v657
        %v659 = vand.u32 %v658, 4294901760
        %v660 = vsub.f32 %v658, %v659
        %v661 = vand.u32 %v660, 4294901760
        %662 = vmatpush1.msra.mxu0 %v661
        %663 = vmatprep.subr.mxu0 0.0
        %v664 = vand.u32 %v390, 4294901760
        %v665 = vsub.f32 %v390, %v664
        %v666 = vand.u32 %v665, 4294901760
        %v667 = vsub.f32 %v665, %v666
        %v668 = vand.u32 %v667, 4294901760
        %669 = vmatpush1.msra.mxu0 %v668
        %670 = vmatprep.subr.mxu0 0.0
        %v671 = vand.u32 %v391, 4294901760
        %v672 = vsub.f32 %v391, %v671
        %v673 = vand.u32 %v672, 4294901760
        %v674 = vsub.f32 %v672, %v673
        %v675 = vand.u32 %v674, 4294901760
        %676 = vmatpush1.msra.mxu0 %v675
        %677 = vmatprep.subr.mxu0 0.0
        %v678 = vand.u32 %v392, 4294901760
        %v679 = vsub.f32 %v392, %v678
        %v680 = vand.u32 %v679, 4294901760
        %v681 = vsub.f32 %v679, %v680
        %v682 = vand.u32 %v681, 4294901760
        %683 = vmatpush1.msra.mxu0 %v682
        %684 = vmatprep.subr.mxu0 0.0
        %v685 = vand.u32 %v393, 4294901760
        %v686 = vsub.f32 %v393, %v685
        %v687 = vand.u32 %v686, 4294901760
        %v688 = vsub.f32 %v686, %v687
        %v689 = vand.u32 %v688, 4294901760
        %690 = vmatpush1.msra.mxu0 %v689
        %691 = vmatprep.subr.mxu0 0.0
        %v692 = vand.u32 %v394, 4294901760
        %v693 = vsub.f32 %v394, %v692
        %v694 = vand.u32 %v693, 4294901760
        %v695 = vsub.f32 %v693, %v694
        %v696 = vand.u32 %v695, 4294901760
        %697 = vmatpush1.msra.mxu0 %v696
        %698 = vmatprep.subr.mxu0 0.0
        %v699 = vand.u32 %v395, 4294901760
        %v700 = vsub.f32 %v395, %v699
        %v701 = vand.u32 %v700, 4294901760
        %v702 = vsub.f32 %v700, %v701
        %v703 = vand.u32 %v702, 4294901760
        %704 = vmatpush1.msra.mxu0 %v703
        %705 = vmatprep.subr.mxu0 0.0
        %v706 = vand.u32 %v396, 4294901760
        %v707 = vsub.f32 %v396, %v706
        %v708 = vand.u32 %v707, 4294901760
        %v709 = vsub.f32 %v707, %v708
        %v710 = vand.u32 %v709, 4294901760
        %711 = vmatpush1.msra.mxu0 %v710
        %712 = vmatprep.subr.mxu0 0.0
        %v713 = vand.u32 %v397, 4294901760
        %v714 = vsub.f32 %v397, %v713
        %v715 = vand.u32 %v714, 4294901760
        %v716 = vsub.f32 %v714, %v715
        %v717 = vand.u32 %v716, 4294901760
        %718 = vmatpush1.msra.mxu0 %v717
        %719 = vmatprep.subr.mxu0 0.0
        %v720 = vand.u32 %v398, 4294901760
        %v721 = vsub.f32 %v398, %v720
        %v722 = vand.u32 %v721, 4294901760
        %v723 = vsub.f32 %v721, %v722
        %v724 = vand.u32 %v723, 4294901760
        %725 = vmatpush1.msra.mxu0 %v724
        %726 = vmatprep.subr.mxu0 0.0
        %v727 = vand.u32 %v399, 4294901760
        %v728 = vsub.f32 %v399, %v727
        %v729 = vand.u32 %v728, 4294901760
        %v730 = vsub.f32 %v728, %v729
        %v731 = vand.u32 %v730, 4294901760
        %732 = vmatpush1.msra.mxu0 %v731
        %733 = vmatprep.subr.mxu0 0.0
        %v734 = vand.u32 %v400, 4294901760
        %v735 = vsub.f32 %v400, %v734
        %v736 = vand.u32 %v735, 4294901760
        %v737 = vsub.f32 %v735, %v736
        %v738 = vand.u32 %v737, 4294901760
        %739 = vmatpush1.msra.mxu0 %v738
        %740 = vmatprep.subr.mxu0 0.0
        %v741 = vand.u32 %v401, 4294901760
        %v742 = vsub.f32 %v401, %v741
        %v743 = vand.u32 %v742, 4294901760
        %v744 = vsub.f32 %v742, %v743
        %v745 = vand.u32 %v744, 4294901760
        %746 = vmatpush1.msra.mxu0 %v745
        %747 = vmatprep.subr.mxu0 0.0
        %v748 = vand.u32 %v402, 4294901760
        %v749 = vsub.f32 %v402, %v748
        %v750 = vand.u32 %v749, 4294901760
        %v751 = vsub.f32 %v749, %v750
        %v752 = vand.u32 %v751, 4294901760
        %753 = vmatpush1.msra.mxu0 %v752
        %754 = vmatprep.subr.mxu0 0.0
        %v755 = vand.u32 %v403, 4294901760
        %v756 = vsub.f32 %v403, %v755
        %v757 = vand.u32 %v756, 4294901760
        %v758 = vsub.f32 %v756, %v757
        %v759 = vand.u32 %v758, 4294901760
        %760 = vmatpush1.msra.mxu0 %v759
        %761 = vmatprep.subr.mxu0 0.0
        %v762 = vand.u32 %v404, 4294901760
        %v763 = vsub.f32 %v404, %v762
        %v764 = vand.u32 %v763, 4294901760
        %v765 = vsub.f32 %v763, %v764
        %v766 = vand.u32 %v765, 4294901760
        %767 = vmatpush1.msra.mxu0 %v766
        %768 = vmatprep.subr.mxu0 0.0
        %v769 = vand.u32 %v405, 4294901760
        %v770 = vsub.f32 %v405, %v769
        %v771 = vand.u32 %v770, 4294901760
        %v772 = vsub.f32 %v770, %v771
        %v773 = vand.u32 %v772, 4294901760
        %774 = vmatpush1.msra.mxu0 %v773
        %775 = vmatprep.subr.mxu0 0.0
        %v776 = vand.u32 %v406, 4294901760
        %v777 = vsub.f32 %v406, %v776
        %v778 = vand.u32 %v777, 4294901760
        %v779 = vsub.f32 %v777, %v778
        %v780 = vand.u32 %v779, 4294901760
        %781 = vmatpush1.msra.mxu0 %v780
        %782 = vmatprep.subr.mxu0 0.0
        %v783 = vand.u32 %v407, 4294901760
        %v784 = vsub.f32 %v407, %v783
        %v785 = vand.u32 %v784, 4294901760
        %v786 = vsub.f32 %v784, %v785
        %v787 = vand.u32 %v786, 4294901760
        %788 = vmatpush1.msra.mxu0 %v787
        %v789 = vand.u32 %v364, 4294901760
        %790 = vmatprep.mubr.f32.mxu0 %v789
        %v791 = vand.u32 %v362, 4294901760
        %792 = vmatmul.mubr.f32.gmra.mrb[0].mxu0 %v791
        %v793 = vpop.f32.mrb[0].mxu0
        %v794 = vadd.f32 %v517, %v793
        %v795 = vpop.f32.mrb[0].mxu0
        %v796 = vand.u32 %v368, 4294901760
        %797 = vmatprep.mubr.f32.mxu0 %v796
        %v798 = vand.u32 %v366, 4294901760
        %799 = vmatmul.mubr.f32.gmra.mrb[0].mxu0 %v798
        %v800 = vpop.f32.mrb[0].mxu0
        %v801 = vadd.f32 %v532, %v800
        %v802 = vpop.f32.mrb[0].mxu0
        %v803 = vand.u32 %v373, 4294901760
        %804 = vmatprep.mubr.f32.mxu0 %v803
        %v805 = vand.u32 %v372, 4294901760
        %806 = vmatmul.mubr.f32.gmra.mrb[0].mxu0 %v805
        %v807 = vpop.f32.mrb[0].mxu0
        %v808 = vadd.f32 %v547, %v807
        %v809 = vpop.f32.mrb[0].mxu0
        %v810 = vand.u32 %v375, 4294901760
        %811 = vmatprep.mubr.f32.mxu0 %v810
        %v812 = vand.u32 %v374, 4294901760
        %813 = vmatmul.mubr.f32.gmra.mrb[0].mxu0 %v812
        %v814 = vpop.f32.mrb[0].mxu0
        %v815 = vadd.f32 %v562, %v814
        %v816 = vpop.f32.mrb[0].mxu0
        %817 = vdwg.mxu0
        %818 = vmatprep.subr.mxu0 0.0
        %v819 = vand.u32 %v376, 4294901760
        %v820 = vsub.f32 %v376, %v819
        %821 = vmatpush1.msra.mxu0 %v820
        %822 = vmatprep.subr.mxu0 0.0
        %v823 = vand.u32 %v377, 4294901760
        %v824 = vsub.f32 %v377, %v823
        %825 = vmatpush1.msra.mxu0 %v824
        %826 = vmatprep.subr.mxu0 0.0
        %v827 = vand.u32 %v378, 4294901760
        %v828 = vsub.f32 %v378, %v827
        %829 = vmatpush1.msra.mxu0 %v828
        %830 = vmatprep.subr.mxu0 0.0
        %v831 = vand.u32 %v379, 4294901760
        %v832 = vsub.f32 %v379, %v831
        %833 = vmatpush1.msra.mxu0 %v832
        %834 = vmatprep.subr.mxu0 0.0
        %v835 = vand.u32 %v380, 4294901760
        %v836 = vsub.f32 %v380, %v835
        %837 = vmatpush1.msra.mxu0 %v836
        %838 = vmatprep.subr.mxu0 0.0
        %v839 = vand.u32 %v381, 4294901760
        %v840 = vsub.f32 %v381, %v839
        %841 = vmatpush1.msra.mxu0 %v840
        %842 = vmatprep.subr.mxu0 0.0
        %v843 = vand.u32 %v382, 4294901760
        %v844 = vsub.f32 %v382, %v843
        %845 = vmatpush1.msra.mxu0 %v844
        %846 = vmatprep.subr.mxu0 0.0
        %v847 = vand.u32 %v383, 4294901760
        %v848 = vsub.f32 %v383, %v847
        %849 = vmatpush1.msra.mxu0 %v848
        %850 = vmatprep.subr.mxu0 0.0
        %v851 = vand.u32 %v384, 4294901760
        %v852 = vsub.f32 %v384, %v851
        %853 = vmatpush1.msra.mxu0 %v852
        %854 = vmatprep.subr.mxu0 0.0
        %v855 = vand.u32 %v385, 4294901760
        %v856 = vsub.f32 %v385, %v855
        %857 = vmatpush1.msra.mxu0 %v856
        %858 = vmatprep.subr.mxu0 0.0
        %v859 = vand.u32 %v386, 4294901760
        %v860 = vsub.f32 %v386, %v859
        %861 = vmatpush1.msra.mxu0 %v860
        %862 = vmatprep.subr.mxu0 0.0
        %v863 = vand.u32 %v387, 4294901760
        %v864 = vsub.f32 %v387, %v863
        %865 = vmatpush1.msra.mxu0 %v864
        %866 = vmatprep.subr.mxu0 0.0
        %v867 = vand.u32 %v388, 4294901760
        %v868 = vsub.f32 %v388, %v867
        %869 = vmatpush1.msra.mxu0 %v868
        %870 = vmatprep.subr.mxu0 0.0
        %v871 = vand.u32 %v389, 4294901760
        %v872 = vsub.f32 %v389, %v871
        %873 = vmatpush1.msra.mxu0 %v872
        %874 = vmatprep.subr.mxu0 0.0
        %v875 = vand.u32 %v390, 4294901760
        %v876 = vsub.f32 %v390, %v875
        %877 = vmatpush1.msra.mxu0 %v876
        %878 = vmatprep.subr.mxu0 0.0
        %v879 = vand.u32 %v391, 4294901760
        %v880 = vsub.f32 %v391, %v879
        %881 = vmatpush1.msra.mxu0 %v880
        %882 = vmatprep.subr.mxu0 0.0
        %v883 = vand.u32 %v392, 4294901760
        %v884 = vsub.f32 %v392, %v883
        %885 = vmatpush1.msra.mxu0 %v884
        %886 = vmatprep.subr.mxu0 0.0
        %v887 = vand.u32 %v393, 4294901760
        %v888 = vsub.f32 %v393, %v887
        %889 = vmatpush1.msra.mxu0 %v888
        %890 = vmatprep.subr.mxu0 0.0
        %v891 = vand.u32 %v394, 4294901760
        %v892 = vsub.f32 %v394, %v891
        %893 = vmatpush1.msra.mxu0 %v892
        %894 = vmatprep.subr.mxu0 0.0
        %v895 = vand.u32 %v395, 4294901760
        %v896 = vsub.f32 %v395, %v895
        %897 = vmatpush1.msra.mxu0 %v896
        %898 = vmatprep.subr.mxu0 0.0
        %v899 = vand.u32 %v396, 4294901760
        %v900 = vsub.f32 %v396, %v899
        %901 = vmatpush1.msra.mxu0 %v900
        %902 = vmatprep.subr.mxu0 0.0
        %v903 = vand.u32 %v397, 4294901760
        %v904 = vsub.f32 %v397, %v903
        %905 = vmatpush1.msra.mxu0 %v904
        %906 = vmatprep.subr.mxu0 0.0
        %v907 = vand.u32 %v398, 4294901760
        %v908 = vsub.f32 %v398, %v907
        %909 = vmatpush1.msra.mxu0 %v908
        %910 = vmatprep.subr.mxu0 0.0
        %v911 = vand.u32 %v399, 4294901760
        %v912 = vsub.f32 %v399, %v911
        %913 = vmatpush1.msra.mxu0 %v912
        %914 = vmatprep.subr.mxu0 0.0
        %v915 = vand.u32 %v400, 4294901760
        %v916 = vsub.f32 %v400, %v915
        %917 = vmatpush1.msra.mxu0 %v916
        %918 = vmatprep.subr.mxu0 0.0
        %v919 = vand.u32 %v401, 4294901760
        %v920 = vsub.f32 %v401, %v919
        %921 = vmatpush1.msra.mxu0 %v920
        %922 = vmatprep.subr.mxu0 0.0
        %v923 = vand.u32 %v402, 4294901760
        %v924 = vsub.f32 %v402, %v923
        %925 = vmatpush1.msra.mxu0 %v924
        %926 = vmatprep.subr.mxu0 0.0
        %v927 = vand.u32 %v403, 4294901760
        %v928 = vsub.f32 %v403, %v927
        %929 = vmatpush1.msra.mxu0 %v928
        %930 = vmatprep.subr.mxu0 0.0
        %v931 = vand.u32 %v404, 4294901760
        %v932 = vsub.f32 %v404, %v931
        %933 = vmatpush1.msra.mxu0 %v932
        %934 = vmatprep.subr.mxu0 0.0
        %v935 = vand.u32 %v405, 4294901760
        %v936 = vsub.f32 %v405, %v935
        %937 = vmatpush1.msra.mxu0 %v936
        %938 = vmatprep.subr.mxu0 0.0
        %v939 = vand.u32 %v406, 4294901760
        %v940 = vsub.f32 %v406, %v939
        %941 = vmatpush1.msra.mxu0 %v940
        %942 = vmatprep.subr.mxu0 0.0
        %v943 = vand.u32 %v407, 4294901760
        %v944 = vsub.f32 %v407, %v943
        %945 = vmatpush1.msra.mxu0 %v944
        %v946 = vand.u32 %v364, 4294901760
        %v947 = vsub.f32 %v364, %v946
        %948 = vmatprep.mubr.f32.mxu0 %v947
        %v949 = vand.u32 %v362, 4294901760
        %v950 = vsub.f32 %v362, %v949
        %951 = vmatmul.mubr.f32.gmra.mrb[0].mxu0 %v950
        %v952 = vpop.f32.mrb[0].mxu0
        %v953 = vadd.f32 %v794, %v952
        %v954 = vpop.f32.mrb[0].mxu0
        %v955 = vand.u32 %v368, 4294901760
        %v956 = vsub.f32 %v368, %v955
        %957 = vmatprep.mubr.f32.mxu0 %v956
        %v958 = vand.u32 %v366, 4294901760
        %v959 = vsub.f32 %v366, %v958
        %960 = vmatmul.mubr.f32.gmra.mrb[0].mxu0 %v959
        %v961 = vpop.f32.mrb[0].mxu0
        %v962 = vadd.f32 %v801, %v961
        %v963 = vpop.f32.mrb[0].mxu0
        %v964 = vand.u32 %v373, 4294901760
        %v965 = vsub.f32 %v373, %v964
        %966 = vmatprep.mubr.f32.mxu0 %v965
        %v967 = vand.u32 %v372, 4294901760
        %v968 = vsub.f32 %v372, %v967
        %969 = vmatmul.mubr.f32.gmra.mrb[0].mxu0 %v968
        %v970 = vpop.f32.mrb[0].mxu0
        %v971 = vadd.f32 %v808, %v970
        %v972 = vpop.f32.mrb[0].mxu0
        %v973 = vand.u32 %v375, 4294901760
        %v974 = vsub.f32 %v375, %v973
        %975 = vmatprep.mubr.f32.mxu0 %v974
        %v976 = vand.u32 %v374, 4294901760
        %v977 = vsub.f32 %v374, %v976
        %978 = vmatmul.mubr.f32.gmra.mrb[0].mxu0 %v977
        %v979 = vpop.f32.mrb[0].mxu0
        %v980 = vadd.f32 %v815, %v979
        %v981 = vpop.f32.mrb[0].mxu0
        %982 = vdwg.mxu0
        %983 = vmatprep.subr.mxu0 0.0
        %v984 = vand.u32 %v376, 4294901760
        %985 = vmatpush1.msra.mxu0 %v984
        %986 = vmatprep.subr.mxu0 0.0
        %v987 = vand.u32 %v377, 4294901760
        %988 = vmatpush1.msra.mxu0 %v987
        %989 = vmatprep.subr.mxu0 0.0
        %v990 = vand.u32 %v378, 4294901760
        %991 = vmatpush1.msra.mxu0 %v990
        %992 = vmatprep.subr.mxu0 0.0
        %v993 = vand.u32 %v379, 4294901760
        %994 = vmatpush1.msra.mxu0 %v993
        %995 = vmatprep.subr.mxu0 0.0
        %v996 = vand.u32 %v380, 4294901760
        %997 = vmatpush1.msra.mxu0 %v996
        %998 = vmatprep.subr.mxu0 0.0
        %v999 = vand.u32 %v381, 4294901760
        %1000 = vmatpush1.msra.mxu0 %v999
        %1001 = vmatprep.subr.mxu0 0.0
        %v1002 = vand.u32 %v382, 4294901760
        %1003 = vmatpush1.msra.mxu0 %v1002
        %1004 = vmatprep.subr.mxu0 0.0
        %v1005 = vand.u32 %v383, 4294901760
        %1006 = vmatpush1.msra.mxu0 %v1005
        %1007 = vmatprep.subr.mxu0 0.0
        %v1008 = vand.u32 %v384, 4294901760
        %1009 = vmatpush1.msra.mxu0 %v1008
        %1010 = vmatprep.subr.mxu0 0.0
        %v1011 = vand.u32 %v385, 4294901760
        %1012 = vmatpush1.msra.mxu0 %v1011
        %1013 = vmatprep.subr.mxu0 0.0
        %v1014 = vand.u32 %v386, 4294901760
        %1015 = vmatpush1.msra.mxu0 %v1014
        %1016 = vmatprep.subr.mxu0 0.0
        %v1017 = vand.u32 %v387, 4294901760
        %1018 = vmatpush1.msra.mxu0 %v1017
        %1019 = vmatprep.subr.mxu0 0.0
        %v1020 = vand.u32 %v388, 4294901760
        %1021 = vmatpush1.msra.mxu0 %v1020
        %1022 = vmatprep.subr.mxu0 0.0
        %v1023 = vand.u32 %v389, 4294901760
        %1024 = vmatpush1.msra.mxu0 %v1023
        %1025 = vmatprep.subr.mxu0 0.0
        %v1026 = vand.u32 %v390, 4294901760
        %1027 = vmatpush1.msra.mxu0 %v1026
        %1028 = vmatprep.subr.mxu0 0.0
        %v1029 = vand.u32 %v391, 4294901760
        %1030 = vmatpush1.msra.mxu0 %v1029
        %1031 = vmatprep.subr.mxu0 0.0
        %v1032 = vand.u32 %v392, 4294901760
        %1033 = vmatpush1.msra.mxu0 %v1032
        %1034 = vmatprep.subr.mxu0 0.0
        %v1035 = vand.u32 %v393, 4294901760
        %1036 = vmatpush1.msra.mxu0 %v1035
        %1037 = vmatprep.subr.mxu0 0.0
        %v1038 = vand.u32 %v394, 4294901760
        %1039 = vmatpush1.msra.mxu0 %v1038
        %1040 = vmatprep.subr.mxu0 0.0
        %v1041 = vand.u32 %v395, 4294901760
        %1042 = vmatpush1.msra.mxu0 %v1041
        %1043 = vmatprep.subr.mxu0 0.0
        %v1044 = vand.u32 %v396, 4294901760
        %1045 = vmatpush1.msra.mxu0 %v1044
        %1046 = vmatprep.subr.mxu0 0.0
        %v1047 = vand.u32 %v397, 4294901760
        %1048 = vmatpush1.msra.mxu0 %v1047
        %1049 = vmatprep.subr.mxu0 0.0
        %v1050 = vand.u32 %v398, 4294901760
        %1051 = vmatpush1.msra.mxu0 %v1050
        %1052 = vmatprep.subr.mxu0 0.0
        %v1053 = vand.u32 %v399, 4294901760
        %1054 = vmatpush1.msra.mxu0 %v1053
        %1055 = vmatprep.subr.mxu0 0.0
        %v1056 = vand.u32 %v400, 4294901760
        %1057 = vmatpush1.msra.mxu0 %v1056
        %1058 = vmatprep.subr.mxu0 0.0
        %v1059 = vand.u32 %v401, 4294901760
        %1060 = vmatpush1.msra.mxu0 %v1059
        %1061 = vmatprep.subr.mxu0 0.0
        %v1062 = vand.u32 %v402, 4294901760
        %1063 = vmatpush1.msra.mxu0 %v1062
        %1064 = vmatprep.subr.mxu0 0.0
        %v1065 = vand.u32 %v403, 4294901760
        %1066 = vmatpush1.msra.mxu0 %v1065
        %1067 = vmatprep.subr.mxu0 0.0
        %v1068 = vand.u32 %v404, 4294901760
        %1069 = vmatpush1.msra.mxu0 %v1068
        %1070 = vmatprep.subr.mxu0 0.0
        %v1071 = vand.u32 %v405, 4294901760
        %1072 = vmatpush1.msra.mxu0 %v1071
        %1073 = vmatprep.subr.mxu0 0.0
        %v1074 = vand.u32 %v406, 4294901760
        %1075 = vmatpush1.msra.mxu0 %v1074
        %1076 = vmatprep.subr.mxu0 0.0
        %v1077 = vand.u32 %v407, 4294901760
        %1078 = vmatpush1.msra.mxu0 %v1077
        %v1079 = vand.u32 %v364, 4294901760
        %v1080 = vsub.f32 %v364, %v1079
        %v1081 = vand.u32 %v1080, 4294901760
        %1082 = vmatprep.mubr.f32.mxu0 %v1081
        %v1083 = vand.u32 %v362, 4294901760
        %v1084 = vsub.f32 %v362, %v1083
        %v1085 = vand.u32 %v1084, 4294901760
        %1086 = vmatmul.mubr.f32.gmra.mrb[0].mxu0 %v1085
        %v1087 = vpop.f32.mrb[0].mxu0
        %v1088 = vadd.f32 %v953, %v1087
        %v1089 = vpop.f32.mrb[0].mxu0
        %v1090 = vand.u32 %v368, 4294901760
        %v1091 = vsub.f32 %v368, %v1090
        %v1092 = vand.u32 %v1091, 4294901760
        %1093 = vmatprep.mubr.f32.mxu0 %v1092
        %v1094 = vand.u32 %v366, 4294901760
        %v1095 = vsub.f32 %v366, %v1094
        %v1096 = vand.u32 %v1095, 4294901760
        %1097 = vmatmul.mubr.f32.gmra.mrb[0].mxu0 %v1096
        %v1098 = vpop.f32.mrb[0].mxu0
        %v1099 = vadd.f32 %v962, %v1098
        %v1100 = vpop.f32.mrb[0].mxu0
        %v1101 = vand.u32 %v373, 4294901760
        %v1102 = vsub.f32 %v373, %v1101
        %v1103 = vand.u32 %v1102, 4294901760
        %1104 = vmatprep.mubr.f32.mxu0 %v1103
        %v1105 = vand.u32 %v372, 4294901760
        %v1106 = vsub.f32 %v372, %v1105
        %v1107 = vand.u32 %v1106, 4294901760
        %1108 = vmatmul.mubr.f32.gmra.mrb[0].mxu0 %v1107
        %v1109 = vpop.f32.mrb[0].mxu0
        %v1110 = vadd.f32 %v971, %v1109
        %v1111 = vpop.f32.mrb[0].mxu0
        %v1112 = vand.u32 %v375, 4294901760
        %v1113 = vsub.f32 %v375, %v1112
        %v1114 = vand.u32 %v1113, 4294901760
        %1115 = vmatprep.mubr.f32.mxu0 %v1114
        %v1116 = vand.u32 %v374, 4294901760
        %v1117 = vsub.f32 %v374, %v1116
        %v1118 = vand.u32 %v1117, 4294901760
        %1119 = vmatmul.mubr.f32.gmra.mrb[0].mxu0 %v1118
        %v1120 = vpop.f32.mrb[0].mxu0
        %v1121 = vadd.f32 %v980, %v1120
        %v1122 = vpop.f32.mrb[0].mxu0
        %1123 = vdwg.mxu0
        %1124 = vmatprep.subr.mxu0 0.0
        %v1125 = vand.u32 %v376, 4294901760
        %v1126 = vsub.f32 %v376, %v1125
        %v1127 = vand.u32 %v1126, 4294901760
        %1128 = vmatpush1.msra.mxu0 %v1127
        %1129 = vmatprep.subr.mxu0 0.0
        %v1130 = vand.u32 %v377, 4294901760
        %v1131 = vsub.f32 %v377, %v1130
        %v1132 = vand.u32 %v1131, 4294901760
        %1133 = vmatpush1.msra.mxu0 %v1132
        %1134 = vmatprep.subr.mxu0 0.0
        %v1135 = vand.u32 %v378, 4294901760
        %v1136 = vsub.f32 %v378, %v1135
        %v1137 = vand.u32 %v1136, 4294901760
        %1138 = vmatpush1.msra.mxu0 %v1137
        %1139 = vmatprep.subr.mxu0 0.0
        %v1140 = vand.u32 %v379, 4294901760
        %v1141 = vsub.f32 %v379, %v1140
        %v1142 = vand.u32 %v1141, 4294901760
        %1143 = vmatpush1.msra.mxu0 %v1142
        %1144 = vmatprep.subr.mxu0 0.0
        %v1145 = vand.u32 %v380, 4294901760
        %v1146 = vsub.f32 %v380, %v1145
        %v1147 = vand.u32 %v1146, 4294901760
        %1148 = vmatpush1.msra.mxu0 %v1147
        %1149 = vmatprep.subr.mxu0 0.0
        %v1150 = vand.u32 %v381, 4294901760
        %v1151 = vsub.f32 %v381, %v1150
        %v1152 = vand.u32 %v1151, 4294901760
        %1153 = vmatpush1.msra.mxu0 %v1152
        %1154 = vmatprep.subr.mxu0 0.0
        %v1155 = vand.u32 %v382, 4294901760
        %v1156 = vsub.f32 %v382, %v1155
        %v1157 = vand.u32 %v1156, 4294901760
        %1158 = vmatpush1.msra.mxu0 %v1157
        %1159 = vmatprep.subr.mxu0 0.0
        %v1160 = vand.u32 %v383, 4294901760
        %v1161 = vsub.f32 %v383, %v1160
        %v1162 = vand.u32 %v1161, 4294901760
        %1163 = vmatpush1.msra.mxu0 %v1162
        %1164 = vmatprep.subr.mxu0 0.0
        %v1165 = vand.u32 %v384, 4294901760
        %v1166 = vsub.f32 %v384, %v1165
        %v1167 = vand.u32 %v1166, 4294901760
        %1168 = vmatpush1.msra.mxu0 %v1167
        %1169 = vmatprep.subr.mxu0 0.0
        %v1170 = vand.u32 %v385, 4294901760
        %v1171 = vsub.f32 %v385, %v1170
        %v1172 = vand.u32 %v1171, 4294901760
        %1173 = vmatpush1.msra.mxu0 %v1172
        %1174 = vmatprep.subr.mxu0 0.0
        %v1175 = vand.u32 %v386, 4294901760
        %v1176 = vsub.f32 %v386, %v1175
        %v1177 = vand.u32 %v1176, 4294901760
        %1178 = vmatpush1.msra.mxu0 %v1177
        %1179 = vmatprep.subr.mxu0 0.0
        %v1180 = vand.u32 %v387, 4294901760
        %v1181 = vsub.f32 %v387, %v1180
        %v1182 = vand.u32 %v1181, 4294901760
        %1183 = vmatpush1.msra.mxu0 %v1182
        %1184 = vmatprep.subr.mxu0 0.0
        %v1185 = vand.u32 %v388, 4294901760
        %v1186 = vsub.f32 %v388, %v1185
        %v1187 = vand.u32 %v1186, 4294901760
        %1188 = vmatpush1.msra.mxu0 %v1187
        %1189 = vmatprep.subr.mxu0 0.0
        %v1190 = vand.u32 %v389, 4294901760
        %v1191 = vsub.f32 %v389, %v1190
        %v1192 = vand.u32 %v1191, 4294901760
        %1193 = vmatpush1.msra.mxu0 %v1192
        %1194 = vmatprep.subr.mxu0 0.0
        %v1195 = vand.u32 %v390, 4294901760
        %v1196 = vsub.f32 %v390, %v1195
        %v1197 = vand.u32 %v1196, 4294901760
        %1198 = vmatpush1.msra.mxu0 %v1197
        %1199 = vmatprep.subr.mxu0 0.0
        %v1200 = vand.u32 %v391, 4294901760
        %v1201 = vsub.f32 %v391, %v1200
        %v1202 = vand.u32 %v1201, 4294901760
        %1203 = vmatpush1.msra.mxu0 %v1202
        %1204 = vmatprep.subr.mxu0 0.0
        %v1205 = vand.u32 %v392, 4294901760
        %v1206 = vsub.f32 %v392, %v1205
        %v1207 = vand.u32 %v1206, 4294901760
        %1208 = vmatpush1.msra.mxu0 %v1207
        %1209 = vmatprep.subr.mxu0 0.0
        %v1210 = vand.u32 %v393, 4294901760
        %v1211 = vsub.f32 %v393, %v1210
        %v1212 = vand.u32 %v1211, 4294901760
        %1213 = vmatpush1.msra.mxu0 %v1212
        %1214 = vmatprep.subr.mxu0 0.0
        %v1215 = vand.u32 %v394, 4294901760
        %v1216 = vsub.f32 %v394, %v1215
        %v1217 = vand.u32 %v1216, 4294901760
        %1218 = vmatpush1.msra.mxu0 %v1217
        %1219 = vmatprep.subr.mxu0 0.0
        %v1220 = vand.u32 %v395, 4294901760
        %v1221 = vsub.f32 %v395, %v1220
        %v1222 = vand.u32 %v1221, 4294901760
        %1223 = vmatpush1.msra.mxu0 %v1222
        %1224 = vmatprep.subr.mxu0 0.0
        %v1225 = vand.u32 %v396, 4294901760
        %v1226 = vsub.f32 %v396, %v1225
        %v1227 = vand.u32 %v1226, 4294901760
        %1228 = vmatpush1.msra.mxu0 %v1227
        %1229 = vmatprep.subr.mxu0 0.0
        %v1230 = vand.u32 %v397, 4294901760
        %v1231 = vsub.f32 %v397, %v1230
        %v1232 = vand.u32 %v1231, 4294901760
        %1233 = vmatpush1.msra.mxu0 %v1232
        %1234 = vmatprep.subr.mxu0 0.0
        %v1235 = vand.u32 %v398, 4294901760
        %v1236 = vsub.f32 %v398, %v1235
        %v1237 = vand.u32 %v1236, 4294901760
        %1238 = vmatpush1.msra.mxu0 %v1237
        %1239 = vmatprep.subr.mxu0 0.0
        %v1240 = vand.u32 %v399, 4294901760
        %v1241 = vsub.f32 %v399, %v1240
        %v1242 = vand.u32 %v1241, 4294901760
        %1243 = vmatpush1.msra.mxu0 %v1242
        %1244 = vmatprep.subr.mxu0 0.0
        %v1245 = vand.u32 %v400, 4294901760
        %v1246 = vsub.f32 %v400, %v1245
        %v1247 = vand.u32 %v1246, 4294901760
        %1248 = vmatpush1.msra.mxu0 %v1247
        %1249 = vmatprep.subr.mxu0 0.0
        %v1250 = vand.u32 %v401, 4294901760
        %v1251 = vsub.f32 %v401, %v1250
        %v1252 = vand.u32 %v1251, 4294901760
        %1253 = vmatpush1.msra.mxu0 %v1252
        %1254 = vmatprep.subr.mxu0 0.0
        %v1255 = vand.u32 %v402, 4294901760
        %v1256 = vsub.f32 %v402, %v1255
        %v1257 = vand.u32 %v1256, 4294901760
        %1258 = vmatpush1.msra.mxu0 %v1257
        %1259 = vmatprep.subr.mxu0 0.0
        %v1260 = vand.u32 %v403, 4294901760
        %v1261 = vsub.f32 %v403, %v1260
        %v1262 = vand.u32 %v1261, 4294901760
        %1263 = vmatpush1.msra.mxu0 %v1262
        %1264 = vmatprep.subr.mxu0 0.0
        %v1265 = vand.u32 %v404, 4294901760
        %v1266 = vsub.f32 %v404, %v1265
        %v1267 = vand.u32 %v1266, 4294901760
        %1268 = vmatpush1.msra.mxu0 %v1267
        %1269 = vmatprep.subr.mxu0 0.0
        %v1270 = vand.u32 %v405, 4294901760
        %v1271 = vsub.f32 %v405, %v1270
        %v1272 = vand.u32 %v1271, 4294901760
        %1273 = vmatpush1.msra.mxu0 %v1272
        %1274 = vmatprep.subr.mxu0 0.0
        %v1275 = vand.u32 %v406, 4294901760
        %v1276 = vsub.f32 %v406, %v1275
        %v1277 = vand.u32 %v1276, 4294901760
        %1278 = vmatpush1.msra.mxu0 %v1277
        %1279 = vmatprep.subr.mxu0 0.0
        %v1280 = vand.u32 %v407, 4294901760
        %v1281 = vsub.f32 %v407, %v1280
        %v1282 = vand.u32 %v1281, 4294901760
        %1283 = vmatpush1.msra.mxu0 %v1282
        %v1284 = vand.u32 %v364, 4294901760
        %1285 = vmatprep.mubr.f32.mxu0 %v1284
        %v1286 = vand.u32 %v362, 4294901760
        %1287 = vmatmul.mubr.f32.gmra.mrb[0].mxu0 %v1286
        %v1288 = vpop.f32.mrb[0].mxu0
        %v1289 = vadd.f32 %v1088, %v1288
        %v1290 = vpop.f32.mrb[0].mxu0
        %v1291 = vand.u32 %v368, 4294901760
        %1292 = vmatprep.mubr.f32.mxu0 %v1291
        %v1293 = vand.u32 %v366, 4294901760
        %1294 = vmatmul.mubr.f32.gmra.mrb[0].mxu0 %v1293
        %v1295 = vpop.f32.mrb[0].mxu0
        %v1296 = vadd.f32 %v1099, %v1295
        %v1297 = vpop.f32.mrb[0].mxu0
        %v1298 = vand.u32 %v373, 4294901760
        %1299 = vmatprep.mubr.f32.mxu0 %v1298
        %v1300 = vand.u32 %v372, 4294901760
        %1301 = vmatmul.mubr.f32.gmra.mrb[0].mxu0 %v1300
        %v1302 = vpop.f32.mrb[0].mxu0
        %v1303 = vadd.f32 %v1110, %v1302
        %v1304 = vpop.f32.mrb[0].mxu0
        %v1305 = vand.u32 %v375, 4294901760
        %1306 = vmatprep.mubr.f32.mxu0 %v1305
        %v1307 = vand.u32 %v374, 4294901760
        %1308 = vmatmul.mubr.f32.gmra.mrb[0].mxu0 %v1307
        %v1309 = vpop.f32.mrb[0].mxu0
        %v1310 = vadd.f32 %v1121, %v1309
        %v1311 = vpop.f32.mrb[0].mxu0
        %1312 = vdwg.mxu0
        %1313 = vmatprep.subr.mxu0 0.0
        %v1314 = vand.u32 %v376, 4294901760
        %1315 = vmatpush1.msra.mxu0 %v1314
        %1316 = vmatprep.subr.mxu0 0.0
        %v1317 = vand.u32 %v377, 4294901760
        %1318 = vmatpush1.msra.mxu0 %v1317
        %1319 = vmatprep.subr.mxu0 0.0
        %v1320 = vand.u32 %v378, 4294901760
        %1321 = vmatpush1.msra.mxu0 %v1320
        %1322 = vmatprep.subr.mxu0 0.0
        %v1323 = vand.u32 %v379, 4294901760
        %1324 = vmatpush1.msra.mxu0 %v1323
        %1325 = vmatprep.subr.mxu0 0.0
        %v1326 = vand.u32 %v380, 4294901760
        %1327 = vmatpush1.msra.mxu0 %v1326
        %1328 = vmatprep.subr.mxu0 0.0
        %v1329 = vand.u32 %v381, 4294901760
        %1330 = vmatpush1.msra.mxu0 %v1329
        %1331 = vmatprep.subr.mxu0 0.0
        %v1332 = vand.u32 %v382, 4294901760
        %1333 = vmatpush1.msra.mxu0 %v1332
        %1334 = vmatprep.subr.mxu0 0.0
        %v1335 = vand.u32 %v383, 4294901760
        %1336 = vmatpush1.msra.mxu0 %v1335
        %1337 = vmatprep.subr.mxu0 0.0
        %v1338 = vand.u32 %v384, 4294901760
        %1339 = vmatpush1.msra.mxu0 %v1338
        %1340 = vmatprep.subr.mxu0 0.0
        %v1341 = vand.u32 %v385, 4294901760
        %1342 = vmatpush1.msra.mxu0 %v1341
        %1343 = vmatprep.subr.mxu0 0.0
        %v1344 = vand.u32 %v386, 4294901760
        %1345 = vmatpush1.msra.mxu0 %v1344
        %1346 = vmatprep.subr.mxu0 0.0
        %v1347 = vand.u32 %v387, 4294901760
        %1348 = vmatpush1.msra.mxu0 %v1347
        %1349 = vmatprep.subr.mxu0 0.0
        %v1350 = vand.u32 %v388, 4294901760
        %1351 = vmatpush1.msra.mxu0 %v1350
        %1352 = vmatprep.subr.mxu0 0.0
        %v1353 = vand.u32 %v389, 4294901760
        %1354 = vmatpush1.msra.mxu0 %v1353
        %1355 = vmatprep.subr.mxu0 0.0
        %v1356 = vand.u32 %v390, 4294901760
        %1357 = vmatpush1.msra.mxu0 %v1356
        %1358 = vmatprep.subr.mxu0 0.0
        %v1359 = vand.u32 %v391, 4294901760
        %1360 = vmatpush1.msra.mxu0 %v1359
        %1361 = vmatprep.subr.mxu0 0.0
        %v1362 = vand.u32 %v392, 4294901760
        %1363 = vmatpush1.msra.mxu0 %v1362
        %1364 = vmatprep.subr.mxu0 0.0
        %v1365 = vand.u32 %v393, 4294901760
        %1366 = vmatpush1.msra.mxu0 %v1365
        %1367 = vmatprep.subr.mxu0 0.0
        %v1368 = vand.u32 %v394, 4294901760
        %1369 = vmatpush1.msra.mxu0 %v1368
        %1370 = vmatprep.subr.mxu0 0.0
        %v1371 = vand.u32 %v395, 4294901760
        %1372 = vmatpush1.msra.mxu0 %v1371
        %1373 = vmatprep.subr.mxu0 0.0
        %v1374 = vand.u32 %v396, 4294901760
        %1375 = vmatpush1.msra.mxu0 %v1374
        %1376 = vmatprep.subr.mxu0 0.0
        %v1377 = vand.u32 %v397, 4294901760
        %1378 = vmatpush1.msra.mxu0 %v1377
        %1379 = vmatprep.subr.mxu0 0.0
        %v1380 = vand.u32 %v398, 4294901760
        %1381 = vmatpush1.msra.mxu0 %v1380
        %1382 = vmatprep.subr.mxu0 0.0
        %v1383 = vand.u32 %v399, 4294901760
        %1384 = vmatpush1.msra.mxu0 %v1383
        %1385 = vmatprep.subr.mxu0 0.0
        %v1386 = vand.u32 %v400, 4294901760
        %1387 = vmatpush1.msra.mxu0 %v1386
        %1388 = vmatprep.subr.mxu0 0.0
        %v1389 = vand.u32 %v401, 4294901760
        %1390 = vmatpush1.msra.mxu0 %v1389
        %1391 = vmatprep.subr.mxu0 0.0
        %v1392 = vand.u32 %v402, 4294901760
        %1393 = vmatpush1.msra.mxu0 %v1392
        %1394 = vmatprep.subr.mxu0 0.0
        %v1395 = vand.u32 %v403, 4294901760
        %1396 = vmatpush1.msra.mxu0 %v1395
        %1397 = vmatprep.subr.mxu0 0.0
        %v1398 = vand.u32 %v404, 4294901760
        %1399 = vmatpush1.msra.mxu0 %v1398
        %1400 = vmatprep.subr.mxu0 0.0
        %v1401 = vand.u32 %v405, 4294901760
        %1402 = vmatpush1.msra.mxu0 %v1401
        %1403 = vmatprep.subr.mxu0 0.0
        %v1404 = vand.u32 %v406, 4294901760
        %1405 = vmatpush1.msra.mxu0 %v1404
        %1406 = vmatprep.subr.mxu0 0.0
        %v1407 = vand.u32 %v407, 4294901760
        %1408 = vmatpush1.msra.mxu0 %v1407
        %v1409 = vand.u32 %v364, 4294901760
        %1410 = vmatprep.mubr.f32.mxu0 %v1409
        %v1411 = vand.u32 %v362, 4294901760
        %1412 = vmatmul.mubr.f32.gmra.mrb[0].mxu0 %v1411
        %v1413 = vpop.f32.mrb[0].mxu0
        %v1414 = vadd.f32 %v1289, %v1413
        %v1415 = vpop.f32.mrb[0].mxu0
        %v1416 = vand.u32 %v368, 4294901760
        %1417 = vmatprep.mubr.f32.mxu0 %v1416
        %v1418 = vand.u32 %v366, 4294901760
        %1419 = vmatmul.mubr.f32.gmra.mrb[0].mxu0 %v1418
        %v1420 = vpop.f32.mrb[0].mxu0
        %v1421 = vadd.f32 %v1296, %v1420
        %v1422 = vpop.f32.mrb[0].mxu0
        %v1423 = vand.u32 %v373, 4294901760
        %1424 = vmatprep.mubr.f32.mxu0 %v1423
        %v1425 = vand.u32 %v372, 4294901760
        %1426 = vmatmul.mubr.f32.gmra.mrb[0].mxu0 %v1425
        %v1427 = vpop.f32.mrb[0].mxu0
        %v1428 = vadd.f32 %v1303, %v1427
        %v1429 = vpop.f32.mrb[0].mxu0
        %v1430 = vand.u32 %v375, 4294901760
        %1431 = vmatprep.mubr.f32.mxu0 %v1430
        %v1432 = vand.u32 %v374, 4294901760
        %1433 = vmatmul.mubr.f32.gmra.mrb[0].mxu0 %v1432
        %v1434 = vpop.f32.mrb[0].mxu0
        %v1435 = vadd.f32 %v1310, %v1434
        %v1436 = vpop.f32.mrb[0].mxu0
        %1437 = vdwg.mxu0
        %v1438 = vmul.f32 %v1414, 0.015625
        %v1439 = vmul.f32 %v1421, 0.015625
        %v1440 = vmul.f32 %v1428, 0.015625
        %v1441 = vmul.f32 %v1435, 0.015625
        %v1442 = vmul.f32 %v1438, %v1438
        %v1443 = vmul.f32 %v1439, %v1439
        %v1444 = vsub.f32 %v1440, %v1442
        %v1445 = vsub.f32 %v1441, %v1443
        %v1446 = vmax.f32 %v1444, 0.0
        %v1447 = vmax.f32 %v1445, 0.0
        %v1448 = vadd.f32 %v1446, 1e-05
        %v1449 = vadd.f32 %v1447, 1e-05
        %v1450 = vrsqrt.pop %v1448
        %v1451 = vrsqrt.pop %v1449
        %1453 = vset.pattern.permute.xlu0 0
        %1454 = vperm.xlu0 %1453, %v370
        %v1455 = vpop.permute.xlu0 %1454
        %1458 = vset.pattern.permute.xlu0 0
        %1459 = vperm.xlu0 %1458, %v371
        %v1460 = vpop.permute.xlu0 %1459
        %v1462 = vmul.f32 %v1455, %v1450
        %v1463 = vmul.f32 %v1460, %v1451
        %v1464 = vmul.f32 %v1438, %v1462
        %v1465 = vmul.f32 %v1439, %v1463
        %1466 = vset.pattern.permute.xlu0 1
        %1467 = vperm.xlu0 %1466, %v370
        %v1468 = vpop.permute.xlu0 %1467
        %1470 = vset.pattern.permute.xlu0 1
        %1471 = vperm.xlu0 %1470, %v371
        %v1472 = vpop.permute.xlu0 %1471
        %v1474 = vsub.f32 %v1468, %v1464
        %v1475 = vsub.f32 %v1472, %v1465
        %v1476 = vld [vmem:[%s4] sm:$0xff]
        %v1477 = vld [vmem:[%s4 + $0x8] sm:$0xff]
        %vm1478 = vcmask 64512
        %v1480 = vsel %vm1478, %v1462, 0
        %v1483 = vsel %vm1478, %v1463, 0
        %v1486 = vsel %vm1478, %v1474, 0
        %v1489 = vsel %vm1478, %v1475, 0
        %v1491 = vand.u32 %v1477, 4294901760
        %1492 = vmatprep.subr.mxu0 %v1491
        %v1493 = vand.u32 %v1476, 4294901760
        %1494 = vmatpush1.msra.mxu0 %v1493
        %1495 = vmatprep.subr.mxu0 0.0
        %1496 = vmatpush1.msra.mxu0 0.0
        %1497 = vmatprep.subr.mxu0 0.0
        %1498 = vmatpush1.msra.mxu0 0.0
        %1499 = vmatprep.subr.mxu0 0.0
        %1500 = vmatpush1.msra.mxu0 0.0
        %1501 = vmatprep.subr.mxu0 0.0
        %1502 = vmatpush1.msra.mxu0 0.0
        %1503 = vmatprep.subr.mxu0 0.0
        %1504 = vmatpush1.msra.mxu0 0.0
        %1505 = vmatprep.subr.mxu0 0.0
        %1506 = vmatpush1.msra.mxu0 0.0
        %1507 = vmatprep.subr.mxu0 0.0
        %1508 = vmatpush1.msra.mxu0 0.0
        %1509 = vmatprep.subr.mxu0 0.0
        %1510 = vmatpush1.msra.mxu0 0.0
        %1511 = vmatprep.subr.mxu0 0.0
        %1512 = vmatpush1.msra.mxu0 0.0
        %1513 = vmatprep.subr.mxu0 0.0
        %1514 = vmatpush1.msra.mxu0 0.0
        %1515 = vmatprep.subr.mxu0 0.0
        %1516 = vmatpush1.msra.mxu0 0.0
        %1517 = vmatprep.subr.mxu0 0.0
        %1518 = vmatpush1.msra.mxu0 0.0
        %1519 = vmatprep.subr.mxu0 0.0
        %1520 = vmatpush1.msra.mxu0 0.0
        %1521 = vmatprep.subr.mxu0 0.0
        %1522 = vmatpush1.msra.mxu0 0.0
        %1523 = vmatprep.subr.mxu0 0.0
        %1524 = vmatpush1.msra.mxu0 0.0
        %1525 = vmatprep.subr.mxu0 0.0
        %1526 = vmatpush1.msra.mxu0 0.0
        %1527 = vmatprep.subr.mxu0 0.0
        %1528 = vmatpush1.msra.mxu0 0.0
        %1529 = vmatprep.subr.mxu0 0.0
        %1530 = vmatpush1.msra.mxu0 0.0
        %1531 = vmatprep.subr.mxu0 0.0
        %1532 = vmatpush1.msra.mxu0 0.0
        %1533 = vmatprep.subr.mxu0 0.0
        %1534 = vmatpush1.msra.mxu0 0.0
        %1535 = vmatprep.subr.mxu0 0.0
        %1536 = vmatpush1.msra.mxu0 0.0
        %1537 = vmatprep.subr.mxu0 0.0
        %1538 = vmatpush1.msra.mxu0 0.0
        %1539 = vmatprep.subr.mxu0 0.0
        %1540 = vmatpush1.msra.mxu0 0.0
        %1541 = vmatprep.subr.mxu0 0.0
        %1542 = vmatpush1.msra.mxu0 0.0
        %1543 = vmatprep.subr.mxu0 0.0
        %1544 = vmatpush1.msra.mxu0 0.0
        %1545 = vmatprep.subr.mxu0 0.0
        %1546 = vmatpush1.msra.mxu0 0.0
        %1547 = vmatprep.subr.mxu0 0.0
        %1548 = vmatpush1.msra.mxu0 0.0
        %1549 = vmatprep.subr.mxu0 0.0
        %1550 = vmatpush1.msra.mxu0 0.0
        %1551 = vmatprep.subr.mxu0 0.0
        %1552 = vmatpush1.msra.mxu0 0.0
        %1553 = vmatprep.subr.mxu0 0.0
        %1554 = vmatpush1.msra.mxu0 0.0
        %1555 = vmatprep.subr.mxu0 0.0
        %1556 = vmatpush1.msra.mxu0 0.0
        %1557 = vmatprep.mubr.f32.mxu0 0.0
        %v1558 = vand.u32 %v1480, 4294901760
        %v1559 = vsub.f32 %v1480, %v1558
        %v1560 = vand.u32 %v1559, 4294901760
        %v1561 = vsub.f32 %v1559, %v1560
        %v1562 = vand.u32 %v1561, 4294901760
        %1563 = vmatmul.mubr.f32.gmra.mrb[0].mxu0 %v1562
        %v1564 = vpop.f32.mrb[0].mxu0
        %v1565 = vadd.f32 0.0, %v1564
        %v1566 = vpop.f32.mrb[0].mxu0
        %v1567 = vadd.f32 0.0, %v1566
        %1568 = vmatprep.mubr.f32.mxu0 0.0
        %v1569 = vand.u32 %v1483, 4294901760
        %v1570 = vsub.f32 %v1483, %v1569
        %v1571 = vand.u32 %v1570, 4294901760
        %v1572 = vsub.f32 %v1570, %v1571
        %v1573 = vand.u32 %v1572, 4294901760
        %1574 = vmatmul.mubr.f32.gmra.mrb[0].mxu0 %v1573
        %v1575 = vpop.f32.mrb[0].mxu0
        %v1576 = vadd.f32 0.0, %v1575
        %v1577 = vpop.f32.mrb[0].mxu0
        %v1578 = vadd.f32 0.0, %v1577
        %1579 = vmatprep.mubr.f32.mxu0 0.0
        %v1580 = vand.u32 %v1486, 4294901760
        %v1581 = vsub.f32 %v1486, %v1580
        %v1582 = vand.u32 %v1581, 4294901760
        %v1583 = vsub.f32 %v1581, %v1582
        %v1584 = vand.u32 %v1583, 4294901760
        %1585 = vmatmul.mubr.f32.gmra.mrb[0].mxu0 %v1584
        %v1586 = vpop.f32.mrb[0].mxu0
        %v1587 = vadd.f32 0.0, %v1586
        %v1588 = vpop.f32.mrb[0].mxu0
        %v1589 = vadd.f32 0.0, %v1588
        %1590 = vmatprep.mubr.f32.mxu0 0.0
        %v1591 = vand.u32 %v1489, 4294901760
        %v1592 = vsub.f32 %v1489, %v1591
        %v1593 = vand.u32 %v1592, 4294901760
        %v1594 = vsub.f32 %v1592, %v1593
        %v1595 = vand.u32 %v1594, 4294901760
        %1596 = vmatmul.mubr.f32.gmra.mrb[0].mxu0 %v1595
        %v1597 = vpop.f32.mrb[0].mxu0
        %v1598 = vadd.f32 0.0, %v1597
        %v1599 = vpop.f32.mrb[0].mxu0
        %v1600 = vadd.f32 0.0, %v1599
        %1601 = vdwg.mxu0
        %v1602 = vand.u32 %v1477, 4294901760
        %v1603 = vsub.f32 %v1477, %v1602
        %v1604 = vand.u32 %v1603, 4294901760
        %v1605 = vsub.f32 %v1603, %v1604
        %v1606 = vand.u32 %v1605, 4294901760
        %1607 = vmatprep.subr.mxu0 %v1606
        %v1608 = vand.u32 %v1476, 4294901760
        %v1609 = vsub.f32 %v1476, %v1608
        %v1610 = vand.u32 %v1609, 4294901760
        %v1611 = vsub.f32 %v1609, %v1610
        %v1612 = vand.u32 %v1611, 4294901760
        %1613 = vmatpush1.msra.mxu0 %v1612
        %1614 = vmatprep.subr.mxu0 0.0
        %1615 = vmatpush1.msra.mxu0 0.0
        %1616 = vmatprep.subr.mxu0 0.0
        %1617 = vmatpush1.msra.mxu0 0.0
        %1618 = vmatprep.subr.mxu0 0.0
        %1619 = vmatpush1.msra.mxu0 0.0
        %1620 = vmatprep.subr.mxu0 0.0
        %1621 = vmatpush1.msra.mxu0 0.0
        %1622 = vmatprep.subr.mxu0 0.0
        %1623 = vmatpush1.msra.mxu0 0.0
        %1624 = vmatprep.subr.mxu0 0.0
        %1625 = vmatpush1.msra.mxu0 0.0
        %1626 = vmatprep.subr.mxu0 0.0
        %1627 = vmatpush1.msra.mxu0 0.0
        %1628 = vmatprep.subr.mxu0 0.0
        %1629 = vmatpush1.msra.mxu0 0.0
        %1630 = vmatprep.subr.mxu0 0.0
        %1631 = vmatpush1.msra.mxu0 0.0
        %1632 = vmatprep.subr.mxu0 0.0
        %1633 = vmatpush1.msra.mxu0 0.0
        %1634 = vmatprep.subr.mxu0 0.0
        %1635 = vmatpush1.msra.mxu0 0.0
        %1636 = vmatprep.subr.mxu0 0.0
        %1637 = vmatpush1.msra.mxu0 0.0
        %1638 = vmatprep.subr.mxu0 0.0
        %1639 = vmatpush1.msra.mxu0 0.0
        %1640 = vmatprep.subr.mxu0 0.0
        %1641 = vmatpush1.msra.mxu0 0.0
        %1642 = vmatprep.subr.mxu0 0.0
        %1643 = vmatpush1.msra.mxu0 0.0
        %1644 = vmatprep.subr.mxu0 0.0
        %1645 = vmatpush1.msra.mxu0 0.0
        %1646 = vmatprep.subr.mxu0 0.0
        %1647 = vmatpush1.msra.mxu0 0.0
        %1648 = vmatprep.subr.mxu0 0.0
        %1649 = vmatpush1.msra.mxu0 0.0
        %1650 = vmatprep.subr.mxu0 0.0
        %1651 = vmatpush1.msra.mxu0 0.0
        %1652 = vmatprep.subr.mxu0 0.0
        %1653 = vmatpush1.msra.mxu0 0.0
        %1654 = vmatprep.subr.mxu0 0.0
        %1655 = vmatpush1.msra.mxu0 0.0
        %1656 = vmatprep.subr.mxu0 0.0
        %1657 = vmatpush1.msra.mxu0 0.0
        %1658 = vmatprep.subr.mxu0 0.0
        %1659 = vmatpush1.msra.mxu0 0.0
        %1660 = vmatprep.subr.mxu0 0.0
        %1661 = vmatpush1.msra.mxu0 0.0
        %1662 = vmatprep.subr.mxu0 0.0
        %1663 = vmatpush1.msra.mxu0 0.0
        %1664 = vmatprep.subr.mxu0 0.0
        %1665 = vmatpush1.msra.mxu0 0.0
        %1666 = vmatprep.subr.mxu0 0.0
        %1667 = vmatpush1.msra.mxu0 0.0
        %1668 = vmatprep.subr.mxu0 0.0
        %1669 = vmatpush1.msra.mxu0 0.0
        %1670 = vmatprep.subr.mxu0 0.0
        %1671 = vmatpush1.msra.mxu0 0.0
        %1672 = vmatprep.subr.mxu0 0.0
        %1673 = vmatpush1.msra.mxu0 0.0
        %1674 = vmatprep.subr.mxu0 0.0
        %1675 = vmatpush1.msra.mxu0 0.0
        %1676 = vmatprep.mubr.f32.mxu0 0.0
        %v1677 = vand.u32 %v1480, 4294901760
        %1678 = vmatmul.mubr.f32.gmra.mrb[0].mxu0 %v1677
        %v1679 = vpop.f32.mrb[0].mxu0
        %v1680 = vadd.f32 %v1565, %v1679
        %v1681 = vpop.f32.mrb[0].mxu0
        %v1682 = vadd.f32 %v1567, %v1681
        %1683 = vmatprep.mubr.f32.mxu0 0.0
        %v1684 = vand.u32 %v1483, 4294901760
        %1685 = vmatmul.mubr.f32.gmra.mrb[0].mxu0 %v1684
        %v1686 = vpop.f32.mrb[0].mxu0
        %v1687 = vadd.f32 %v1576, %v1686
        %v1688 = vpop.f32.mrb[0].mxu0
        %v1689 = vadd.f32 %v1578, %v1688
        %1690 = vmatprep.mubr.f32.mxu0 0.0
        %v1691 = vand.u32 %v1486, 4294901760
        %1692 = vmatmul.mubr.f32.gmra.mrb[0].mxu0 %v1691
        %v1693 = vpop.f32.mrb[0].mxu0
        %v1694 = vadd.f32 %v1587, %v1693
        %v1695 = vpop.f32.mrb[0].mxu0
        %v1696 = vadd.f32 %v1589, %v1695
        %1697 = vmatprep.mubr.f32.mxu0 0.0
        %v1698 = vand.u32 %v1489, 4294901760
        %1699 = vmatmul.mubr.f32.gmra.mrb[0].mxu0 %v1698
        %v1700 = vpop.f32.mrb[0].mxu0
        %v1701 = vadd.f32 %v1598, %v1700
        %v1702 = vpop.f32.mrb[0].mxu0
        %v1703 = vadd.f32 %v1600, %v1702
        %1704 = vdwg.mxu0
        %v1705 = vand.u32 %v1477, 4294901760
        %v1706 = vsub.f32 %v1477, %v1705
        %1707 = vmatprep.subr.mxu0 %v1706
        %v1708 = vand.u32 %v1476, 4294901760
        %v1709 = vsub.f32 %v1476, %v1708
        %1710 = vmatpush1.msra.mxu0 %v1709
        %1711 = vmatprep.subr.mxu0 0.0
        %1712 = vmatpush1.msra.mxu0 0.0
        %1713 = vmatprep.subr.mxu0 0.0
        %1714 = vmatpush1.msra.mxu0 0.0
        %1715 = vmatprep.subr.mxu0 0.0
        %1716 = vmatpush1.msra.mxu0 0.0
        %1717 = vmatprep.subr.mxu0 0.0
        %1718 = vmatpush1.msra.mxu0 0.0
        %1719 = vmatprep.subr.mxu0 0.0
        %1720 = vmatpush1.msra.mxu0 0.0
        %1721 = vmatprep.subr.mxu0 0.0
        %1722 = vmatpush1.msra.mxu0 0.0
        %1723 = vmatprep.subr.mxu0 0.0
        %1724 = vmatpush1.msra.mxu0 0.0
        %1725 = vmatprep.subr.mxu0 0.0
        %1726 = vmatpush1.msra.mxu0 0.0
        %1727 = vmatprep.subr.mxu0 0.0
        %1728 = vmatpush1.msra.mxu0 0.0
        %1729 = vmatprep.subr.mxu0 0.0
        %1730 = vmatpush1.msra.mxu0 0.0
        %1731 = vmatprep.subr.mxu0 0.0
        %1732 = vmatpush1.msra.mxu0 0.0
        %1733 = vmatprep.subr.mxu0 0.0
        %1734 = vmatpush1.msra.mxu0 0.0
        %1735 = vmatprep.subr.mxu0 0.0
        %1736 = vmatpush1.msra.mxu0 0.0
        %1737 = vmatprep.subr.mxu0 0.0
        %1738 = vmatpush1.msra.mxu0 0.0
        %1739 = vmatprep.subr.mxu0 0.0
        %1740 = vmatpush1.msra.mxu0 0.0
        %1741 = vmatprep.subr.mxu0 0.0
        %1742 = vmatpush1.msra.mxu0 0.0
        %1743 = vmatprep.subr.mxu0 0.0
        %1744 = vmatpush1.msra.mxu0 0.0
        %1745 = vmatprep.subr.mxu0 0.0
        %1746 = vmatpush1.msra.mxu0 0.0
        %1747 = vmatprep.subr.mxu0 0.0
        %1748 = vmatpush1.msra.mxu0 0.0
        %1749 = vmatprep.subr.mxu0 0.0
        %1750 = vmatpush1.msra.mxu0 0.0
        %1751 = vmatprep.subr.mxu0 0.0
        %1752 = vmatpush1.msra.mxu0 0.0
        %1753 = vmatprep.subr.mxu0 0.0
        %1754 = vmatpush1.msra.mxu0 0.0
        %1755 = vmatprep.subr.mxu0 0.0
        %1756 = vmatpush1.msra.mxu0 0.0
        %1757 = vmatprep.subr.mxu0 0.0
        %1758 = vmatpush1.msra.mxu0 0.0
        %1759 = vmatprep.subr.mxu0 0.0
        %1760 = vmatpush1.msra.mxu0 0.0
        %1761 = vmatprep.subr.mxu0 0.0
        %1762 = vmatpush1.msra.mxu0 0.0
        %1763 = vmatprep.subr.mxu0 0.0
        %1764 = vmatpush1.msra.mxu0 0.0
        %1765 = vmatprep.subr.mxu0 0.0
        %1766 = vmatpush1.msra.mxu0 0.0
        %1767 = vmatprep.subr.mxu0 0.0
        %1768 = vmatpush1.msra.mxu0 0.0
        %1769 = vmatprep.subr.mxu0 0.0
        %1770 = vmatpush1.msra.mxu0 0.0
        %1771 = vmatprep.subr.mxu0 0.0
        %1772 = vmatpush1.msra.mxu0 0.0
        %1773 = vmatprep.mubr.f32.mxu0 0.0
        %v1774 = vand.u32 %v1480, 4294901760
        %v1775 = vsub.f32 %v1480, %v1774
        %1776 = vmatmul.mubr.f32.gmra.mrb[0].mxu0 %v1775
        %v1777 = vpop.f32.mrb[0].mxu0
        %v1778 = vadd.f32 %v1680, %v1777
        %v1779 = vpop.f32.mrb[0].mxu0
        %v1780 = vadd.f32 %v1682, %v1779
        %1781 = vmatprep.mubr.f32.mxu0 0.0
        %v1782 = vand.u32 %v1483, 4294901760
        %v1783 = vsub.f32 %v1483, %v1782
        %1784 = vmatmul.mubr.f32.gmra.mrb[0].mxu0 %v1783
        %v1785 = vpop.f32.mrb[0].mxu0
        %v1786 = vadd.f32 %v1687, %v1785
        %v1787 = vpop.f32.mrb[0].mxu0
        %v1788 = vadd.f32 %v1689, %v1787
        %1789 = vmatprep.mubr.f32.mxu0 0.0
        %v1790 = vand.u32 %v1486, 4294901760
        %v1791 = vsub.f32 %v1486, %v1790
        %1792 = vmatmul.mubr.f32.gmra.mrb[0].mxu0 %v1791
        %v1793 = vpop.f32.mrb[0].mxu0
        %v1794 = vadd.f32 %v1694, %v1793
        %v1795 = vpop.f32.mrb[0].mxu0
        %v1796 = vadd.f32 %v1696, %v1795
        %1797 = vmatprep.mubr.f32.mxu0 0.0
        %v1798 = vand.u32 %v1489, 4294901760
        %v1799 = vsub.f32 %v1489, %v1798
        %1800 = vmatmul.mubr.f32.gmra.mrb[0].mxu0 %v1799
        %v1801 = vpop.f32.mrb[0].mxu0
        %v1802 = vadd.f32 %v1701, %v1801
        %v1803 = vpop.f32.mrb[0].mxu0
        %v1804 = vadd.f32 %v1703, %v1803
        %1805 = vdwg.mxu0
        %v1806 = vand.u32 %v1477, 4294901760
        %1807 = vmatprep.subr.mxu0 %v1806
        %v1808 = vand.u32 %v1476, 4294901760
        %1809 = vmatpush1.msra.mxu0 %v1808
        %1810 = vmatprep.subr.mxu0 0.0
        %1811 = vmatpush1.msra.mxu0 0.0
        %1812 = vmatprep.subr.mxu0 0.0
        %1813 = vmatpush1.msra.mxu0 0.0
        %1814 = vmatprep.subr.mxu0 0.0
        %1815 = vmatpush1.msra.mxu0 0.0
        %1816 = vmatprep.subr.mxu0 0.0
        %1817 = vmatpush1.msra.mxu0 0.0
        %1818 = vmatprep.subr.mxu0 0.0
        %1819 = vmatpush1.msra.mxu0 0.0
        %1820 = vmatprep.subr.mxu0 0.0
        %1821 = vmatpush1.msra.mxu0 0.0
        %1822 = vmatprep.subr.mxu0 0.0
        %1823 = vmatpush1.msra.mxu0 0.0
        %1824 = vmatprep.subr.mxu0 0.0
        %1825 = vmatpush1.msra.mxu0 0.0
        %1826 = vmatprep.subr.mxu0 0.0
        %1827 = vmatpush1.msra.mxu0 0.0
        %1828 = vmatprep.subr.mxu0 0.0
        %1829 = vmatpush1.msra.mxu0 0.0
        %1830 = vmatprep.subr.mxu0 0.0
        %1831 = vmatpush1.msra.mxu0 0.0
        %1832 = vmatprep.subr.mxu0 0.0
        %1833 = vmatpush1.msra.mxu0 0.0
        %1834 = vmatprep.subr.mxu0 0.0
        %1835 = vmatpush1.msra.mxu0 0.0
        %1836 = vmatprep.subr.mxu0 0.0
        %1837 = vmatpush1.msra.mxu0 0.0
        %1838 = vmatprep.subr.mxu0 0.0
        %1839 = vmatpush1.msra.mxu0 0.0
        %1840 = vmatprep.subr.mxu0 0.0
        %1841 = vmatpush1.msra.mxu0 0.0
        %1842 = vmatprep.subr.mxu0 0.0
        %1843 = vmatpush1.msra.mxu0 0.0
        %1844 = vmatprep.subr.mxu0 0.0
        %1845 = vmatpush1.msra.mxu0 0.0
        %1846 = vmatprep.subr.mxu0 0.0
        %1847 = vmatpush1.msra.mxu0 0.0
        %1848 = vmatprep.subr.mxu0 0.0
        %1849 = vmatpush1.msra.mxu0 0.0
        %1850 = vmatprep.subr.mxu0 0.0
        %1851 = vmatpush1.msra.mxu0 0.0
        %1852 = vmatprep.subr.mxu0 0.0
        %1853 = vmatpush1.msra.mxu0 0.0
        %1854 = vmatprep.subr.mxu0 0.0
        %1855 = vmatpush1.msra.mxu0 0.0
        %1856 = vmatprep.subr.mxu0 0.0
        %1857 = vmatpush1.msra.mxu0 0.0
        %1858 = vmatprep.subr.mxu0 0.0
        %1859 = vmatpush1.msra.mxu0 0.0
        %1860 = vmatprep.subr.mxu0 0.0
        %1861 = vmatpush1.msra.mxu0 0.0
        %1862 = vmatprep.subr.mxu0 0.0
        %1863 = vmatpush1.msra.mxu0 0.0
        %1864 = vmatprep.subr.mxu0 0.0
        %1865 = vmatpush1.msra.mxu0 0.0
        %1866 = vmatprep.subr.mxu0 0.0
        %1867 = vmatpush1.msra.mxu0 0.0
        %1868 = vmatprep.subr.mxu0 0.0
        %1869 = vmatpush1.msra.mxu0 0.0
        %1870 = vmatprep.subr.mxu0 0.0
        %1871 = vmatpush1.msra.mxu0 0.0
        %1872 = vmatprep.mubr.f32.mxu0 0.0
        %v1873 = vand.u32 %v1480, 4294901760
        %v1874 = vsub.f32 %v1480, %v1873
        %v1875 = vand.u32 %v1874, 4294901760
        %1876 = vmatmul.mubr.f32.gmra.mrb[0].mxu0 %v1875
        %v1877 = vpop.f32.mrb[0].mxu0
        %v1878 = vadd.f32 %v1778, %v1877
        %v1879 = vpop.f32.mrb[0].mxu0
        %v1880 = vadd.f32 %v1780, %v1879
        %1881 = vmatprep.mubr.f32.mxu0 0.0
        %v1882 = vand.u32 %v1483, 4294901760
        %v1883 = vsub.f32 %v1483, %v1882
        %v1884 = vand.u32 %v1883, 4294901760
        %1885 = vmatmul.mubr.f32.gmra.mrb[0].mxu0 %v1884
        %v1886 = vpop.f32.mrb[0].mxu0
        %v1887 = vadd.f32 %v1786, %v1886
        %v1888 = vpop.f32.mrb[0].mxu0
        %v1889 = vadd.f32 %v1788, %v1888
        %1890 = vmatprep.mubr.f32.mxu0 0.0
        %v1891 = vand.u32 %v1486, 4294901760
        %v1892 = vsub.f32 %v1486, %v1891
        %v1893 = vand.u32 %v1892, 4294901760
        %1894 = vmatmul.mubr.f32.gmra.mrb[0].mxu0 %v1893
        %v1895 = vpop.f32.mrb[0].mxu0
        %v1896 = vadd.f32 %v1794, %v1895
        %v1897 = vpop.f32.mrb[0].mxu0
        %v1898 = vadd.f32 %v1796, %v1897
        %1899 = vmatprep.mubr.f32.mxu0 0.0
        %v1900 = vand.u32 %v1489, 4294901760
        %v1901 = vsub.f32 %v1489, %v1900
        %v1902 = vand.u32 %v1901, 4294901760
        %1903 = vmatmul.mubr.f32.gmra.mrb[0].mxu0 %v1902
        %v1904 = vpop.f32.mrb[0].mxu0
        %v1905 = vadd.f32 %v1802, %v1904
        %v1906 = vpop.f32.mrb[0].mxu0
        %v1907 = vadd.f32 %v1804, %v1906
        %1908 = vdwg.mxu0
        %v1909 = vand.u32 %v1477, 4294901760
        %v1910 = vsub.f32 %v1477, %v1909
        %v1911 = vand.u32 %v1910, 4294901760
        %1912 = vmatprep.subr.mxu0 %v1911
        %v1913 = vand.u32 %v1476, 4294901760
        %v1914 = vsub.f32 %v1476, %v1913
        %v1915 = vand.u32 %v1914, 4294901760
        %1916 = vmatpush1.msra.mxu0 %v1915
        %1917 = vmatprep.subr.mxu0 0.0
        %1918 = vmatpush1.msra.mxu0 0.0
        %1919 = vmatprep.subr.mxu0 0.0
        %1920 = vmatpush1.msra.mxu0 0.0
        %1921 = vmatprep.subr.mxu0 0.0
        %1922 = vmatpush1.msra.mxu0 0.0
        %1923 = vmatprep.subr.mxu0 0.0
        %1924 = vmatpush1.msra.mxu0 0.0
        %1925 = vmatprep.subr.mxu0 0.0
        %1926 = vmatpush1.msra.mxu0 0.0
        %1927 = vmatprep.subr.mxu0 0.0
        %1928 = vmatpush1.msra.mxu0 0.0
        %1929 = vmatprep.subr.mxu0 0.0
        %1930 = vmatpush1.msra.mxu0 0.0
        %1931 = vmatprep.subr.mxu0 0.0
        %1932 = vmatpush1.msra.mxu0 0.0
        %1933 = vmatprep.subr.mxu0 0.0
        %1934 = vmatpush1.msra.mxu0 0.0
        %1935 = vmatprep.subr.mxu0 0.0
        %1936 = vmatpush1.msra.mxu0 0.0
        %1937 = vmatprep.subr.mxu0 0.0
        %1938 = vmatpush1.msra.mxu0 0.0
        %1939 = vmatprep.subr.mxu0 0.0
        %1940 = vmatpush1.msra.mxu0 0.0
        %1941 = vmatprep.subr.mxu0 0.0
        %1942 = vmatpush1.msra.mxu0 0.0
        %1943 = vmatprep.subr.mxu0 0.0
        %1944 = vmatpush1.msra.mxu0 0.0
        %1945 = vmatprep.subr.mxu0 0.0
        %1946 = vmatpush1.msra.mxu0 0.0
        %1947 = vmatprep.subr.mxu0 0.0
        %1948 = vmatpush1.msra.mxu0 0.0
        %1949 = vmatprep.subr.mxu0 0.0
        %1950 = vmatpush1.msra.mxu0 0.0
        %1951 = vmatprep.subr.mxu0 0.0
        %1952 = vmatpush1.msra.mxu0 0.0
        %1953 = vmatprep.subr.mxu0 0.0
        %1954 = vmatpush1.msra.mxu0 0.0
        %1955 = vmatprep.subr.mxu0 0.0
        %1956 = vmatpush1.msra.mxu0 0.0
        %1957 = vmatprep.subr.mxu0 0.0
        %1958 = vmatpush1.msra.mxu0 0.0
        %1959 = vmatprep.subr.mxu0 0.0
        %1960 = vmatpush1.msra.mxu0 0.0
        %1961 = vmatprep.subr.mxu0 0.0
        %1962 = vmatpush1.msra.mxu0 0.0
        %1963 = vmatprep.subr.mxu0 0.0
        %1964 = vmatpush1.msra.mxu0 0.0
        %1965 = vmatprep.subr.mxu0 0.0
        %1966 = vmatpush1.msra.mxu0 0.0
        %1967 = vmatprep.subr.mxu0 0.0
        %1968 = vmatpush1.msra.mxu0 0.0
        %1969 = vmatprep.subr.mxu0 0.0
        %1970 = vmatpush1.msra.mxu0 0.0
        %1971 = vmatprep.subr.mxu0 0.0
        %1972 = vmatpush1.msra.mxu0 0.0
        %1973 = vmatprep.subr.mxu0 0.0
        %1974 = vmatpush1.msra.mxu0 0.0
        %1975 = vmatprep.subr.mxu0 0.0
        %1976 = vmatpush1.msra.mxu0 0.0
        %1977 = vmatprep.subr.mxu0 0.0
        %1978 = vmatpush1.msra.mxu0 0.0
        %1979 = vmatprep.mubr.f32.mxu0 0.0
        %v1980 = vand.u32 %v1480, 4294901760
        %1981 = vmatmul.mubr.f32.gmra.mrb[0].mxu0 %v1980
        %v1982 = vpop.f32.mrb[0].mxu0
        %v1983 = vadd.f32 %v1878, %v1982
        %v1984 = vpop.f32.mrb[0].mxu0
        %v1985 = vadd.f32 %v1880, %v1984
        %1986 = vmatprep.mubr.f32.mxu0 0.0
        %v1987 = vand.u32 %v1483, 4294901760
        %1988 = vmatmul.mubr.f32.gmra.mrb[0].mxu0 %v1987
        %v1989 = vpop.f32.mrb[0].mxu0
        %v1990 = vadd.f32 %v1887, %v1989
        %v1991 = vpop.f32.mrb[0].mxu0
        %v1992 = vadd.f32 %v1889, %v1991
        %1993 = vmatprep.mubr.f32.mxu0 0.0
        %v1994 = vand.u32 %v1486, 4294901760
        %1995 = vmatmul.mubr.f32.gmra.mrb[0].mxu0 %v1994
        %v1996 = vpop.f32.mrb[0].mxu0
        %v1997 = vadd.f32 %v1896, %v1996
        %v1998 = vpop.f32.mrb[0].mxu0
        %v1999 = vadd.f32 %v1898, %v1998
        %2000 = vmatprep.mubr.f32.mxu0 0.0
        %v2001 = vand.u32 %v1489, 4294901760
        %2002 = vmatmul.mubr.f32.gmra.mrb[0].mxu0 %v2001
        %v2003 = vpop.f32.mrb[0].mxu0
        %v2004 = vadd.f32 %v1905, %v2003
        %v2005 = vpop.f32.mrb[0].mxu0
        %v2006 = vadd.f32 %v1907, %v2005
        %2007 = vdwg.mxu0
        %v2008 = vand.u32 %v1477, 4294901760
        %2009 = vmatprep.subr.mxu0 %v2008
        %v2010 = vand.u32 %v1476, 4294901760
        %2011 = vmatpush1.msra.mxu0 %v2010
        %2012 = vmatprep.subr.mxu0 0.0
        %2013 = vmatpush1.msra.mxu0 0.0
        %2014 = vmatprep.subr.mxu0 0.0
        %2015 = vmatpush1.msra.mxu0 0.0
        %2016 = vmatprep.subr.mxu0 0.0
        %2017 = vmatpush1.msra.mxu0 0.0
        %2018 = vmatprep.subr.mxu0 0.0
        %2019 = vmatpush1.msra.mxu0 0.0
        %2020 = vmatprep.subr.mxu0 0.0
        %2021 = vmatpush1.msra.mxu0 0.0
        %2022 = vmatprep.subr.mxu0 0.0
        %2023 = vmatpush1.msra.mxu0 0.0
        %2024 = vmatprep.subr.mxu0 0.0
        %2025 = vmatpush1.msra.mxu0 0.0
        %2026 = vmatprep.subr.mxu0 0.0
        %2027 = vmatpush1.msra.mxu0 0.0
        %2028 = vmatprep.subr.mxu0 0.0
        %2029 = vmatpush1.msra.mxu0 0.0
        %2030 = vmatprep.subr.mxu0 0.0
        %2031 = vmatpush1.msra.mxu0 0.0
        %2032 = vmatprep.subr.mxu0 0.0
        %2033 = vmatpush1.msra.mxu0 0.0
        %2034 = vmatprep.subr.mxu0 0.0
        %2035 = vmatpush1.msra.mxu0 0.0
        %2036 = vmatprep.subr.mxu0 0.0
        %2037 = vmatpush1.msra.mxu0 0.0
        %2038 = vmatprep.subr.mxu0 0.0
        %2039 = vmatpush1.msra.mxu0 0.0
        %2040 = vmatprep.subr.mxu0 0.0
        %2041 = vmatpush1.msra.mxu0 0.0
        %2042 = vmatprep.subr.mxu0 0.0
        %2043 = vmatpush1.msra.mxu0 0.0
        %2044 = vmatprep.subr.mxu0 0.0
        %2045 = vmatpush1.msra.mxu0 0.0
        %2046 = vmatprep.subr.mxu0 0.0
        %2047 = vmatpush1.msra.mxu0 0.0
        %2048 = vmatprep.subr.mxu0 0.0
        %2049 = vmatpush1.msra.mxu0 0.0
        %2050 = vmatprep.subr.mxu0 0.0
        %2051 = vmatpush1.msra.mxu0 0.0
        %2052 = vmatprep.subr.mxu0 0.0
        %2053 = vmatpush1.msra.mxu0 0.0
        %2054 = vmatprep.subr.mxu0 0.0
        %2055 = vmatpush1.msra.mxu0 0.0
        %2056 = vmatprep.subr.mxu0 0.0
        %2057 = vmatpush1.msra.mxu0 0.0
        %2058 = vmatprep.subr.mxu0 0.0
        %2059 = vmatpush1.msra.mxu0 0.0
        %2060 = vmatprep.subr.mxu0 0.0
        %2061 = vmatpush1.msra.mxu0 0.0
        %2062 = vmatprep.subr.mxu0 0.0
        %2063 = vmatpush1.msra.mxu0 0.0
        %2064 = vmatprep.subr.mxu0 0.0
        %2065 = vmatpush1.msra.mxu0 0.0
        %2066 = vmatprep.subr.mxu0 0.0
        %2067 = vmatpush1.msra.mxu0 0.0
        %2068 = vmatprep.subr.mxu0 0.0
        %2069 = vmatpush1.msra.mxu0 0.0
        %2070 = vmatprep.subr.mxu0 0.0
        %2071 = vmatpush1.msra.mxu0 0.0
        %2072 = vmatprep.subr.mxu0 0.0
        %2073 = vmatpush1.msra.mxu0 0.0
        %2074 = vmatprep.mubr.f32.mxu0 0.0
        %v2075 = vand.u32 %v1480, 4294901760
        %2076 = vmatmul.mubr.f32.gmra.mrb[0].mxu0 %v2075
        %v2077 = vpop.f32.mrb[0].mxu0
        %v2078 = vadd.f32 %v1983, %v2077
        %v2079 = vpop.f32.mrb[0].mxu0
        %v2080 = vadd.f32 %v1985, %v2079
        %2081 = vmatprep.mubr.f32.mxu0 0.0
        %v2082 = vand.u32 %v1483, 4294901760
        %2083 = vmatmul.mubr.f32.gmra.mrb[0].mxu0 %v2082
        %v2084 = vpop.f32.mrb[0].mxu0
        %v2085 = vadd.f32 %v1990, %v2084
        %v2086 = vpop.f32.mrb[0].mxu0
        %v2087 = vadd.f32 %v1992, %v2086
        %2088 = vmatprep.mubr.f32.mxu0 0.0
        %v2089 = vand.u32 %v1486, 4294901760
        %2090 = vmatmul.mubr.f32.gmra.mrb[0].mxu0 %v2089
        %v2091 = vpop.f32.mrb[0].mxu0
        %v2092 = vadd.f32 %v1997, %v2091
        %v2093 = vpop.f32.mrb[0].mxu0
        %v2094 = vadd.f32 %v1999, %v2093
        %2095 = vmatprep.mubr.f32.mxu0 0.0
        %v2096 = vand.u32 %v1489, 4294901760
        %2097 = vmatmul.mubr.f32.gmra.mrb[0].mxu0 %v2096
        %v2098 = vpop.f32.mrb[0].mxu0
        %v2099 = vadd.f32 %v2004, %v2098
        %v2100 = vpop.f32.mrb[0].mxu0
        %v2101 = vadd.f32 %v2006, %v2100
        %2102 = vdwg.mxu0
        %v2103 = vmul.f32 %v362, %v2078
        %v2104 = vmul.f32 %v364, %v2080
        %v2105 = vmul.f32 %v366, %v2085
        %v2106 = vmul.f32 %v368, %v2087
        %v2107 = vadd.f32 %v2103, %v2092
        %v2108 = vadd.f32 %v2104, %v2094
        %v2109 = vadd.f32 %v2105, %v2099
        %v2110 = vadd.f32 %v2106, %v2101
        %v2111 = vxor.u32 %v2109, 2147483648
        %v2112 = vxor.u32 %v2110, 2147483648
        %v2113 = vmul.f32 %v2111, 1.442695
        %v2114 = vpow.pop %v2113
        %v2115 = vmul.f32 %v2112, 1.442695
        %v2116 = vpow.pop %v2115
        %v2117 = vadd.f32 %v2114, 1.0
        %v2118 = vadd.f32 %v2116, 1.0
        %v2119 = vrcp.pop %v2117
        %v2120 = vmul.f32 1.0, %v2119
        %v2121 = vrcp.pop %v2118
        %v2122 = vmul.f32 1.0, %v2121
        %v2123 = vmul.f32 %v2107, %v2120
        %v2124 = vmul.f32 %v2108, %v2122
        %2125 = vst [vmem:[%s276] sm:$0xff] %v2123
        %2126 = vst [vmem:[%s276 + $0x8] sm:$0xff] %v2124
        %s2127 = smul.u32 2, %s16
        %p2128 = scmp.lt.s32.totalorder %s2127, 3
        %s2129 = scalar_select %p2128, %s2127, 3
        %s2130 = smul.addr %s2129, 8
        %s2131 = scalar_lea.vmem %s5, %s2130
        // Predicated region
        $region79: #{downsample_generator_forward.1} parent=73 // pred_check
          %p2132 = pneg %p144
        $region80: #{downsample_generator_forward.1} parent=73 // pred_check_branch
          %2134 = sbr.rel (%p2132) target = $region82
        $region81: #{downsample_generator_forward.1} parent=73 // pred_region
          %s2135 = smul.u32 2, %s16
        $region82: #{downsample_generator_forward.1} parent=73 // pred_fallthru
          _
      $region74: #{downsample_generator_forward.1} parent=5 // pred_fallthru
        _
      %p2136 = scmp.le.s32.totalorder 2, %s11
      // Predicated region
      $region83: #{downsample_generator_forward.1} parent=5 // pred_check
        %p2137 = pneg %p2136
      $region84: #{downsample_generator_forward.1} parent=5 // pred_check_branch
        %2139 = sbr.rel (%p2137) target = $region86
      $region85: #{downsample_generator_forward.1} parent=5 // pred_region
        %s2140 = ssub.s32 %s11, 2
        // Predicated region
        $region87: #{downsample_generator_forward.1} parent=85 // pred_check
          %p2141 = pneg %p150
        $region88: #{downsample_generator_forward.1} parent=85 // pred_check_branch
          %2143 = sbr.rel (%p2141) target = $region90
        $region89: #{downsample_generator_forward.1} parent=85 // pred_region
          %s2144 = smul.u32 2, %s17
          %p2145 = scmp.lt.s32.totalorder %s2144, 3
          %s2146 = scalar_select %p2145, %s2144, 3
          %s2147 = smul.addr %s2146, 8
          %s2148 = scalar_lea.vmem %s5, %s2147
        $region90: #{downsample_generator_forward.1} parent=85 // pred_fallthru
          _
      $region86: #{downsample_generator_forward.1} parent=5 // pred_fallthru
        _
    $region6: #{downsample_generator_forward.1} parent=1 // loop_footer
      %s15 = sadd.s32 1, %s11
    $region7: #{downsample_generator_forward.1} parent=1 // loop_footer_branch
      %10 = sbr.rel target = $region3
    $region8: #{downsample_generator_forward.1} parent=1 // loop_exit
      _

</llo_original>
